<compile_context>
chip_gen: v7x
topology: tpu7x:2x2x1
jax: 0.10.0
libtpu: 0.0.40
codegen_flags: <defaults>
</compile_context>

<pallas_src>
import jax
import jax.numpy as jnp
from jax.experimental import pallas as pl
from jax.experimental.pallas import tpu as pltpu


# -----------------------------------------------------------------------------
# Kernel
# -----------------------------------------------------------------------------
def _siamese_kernel(
    xt_ref, yi_ref,                                    # bf16 activations
    wp_a_ref, bp_a_ref, wp_b_ref, bp_b_ref,            # packed projectors
    wf_a_ref, wf_t_ref, wf_b_ref, wf_i_ref, bfus_ref,  # row-split fusion
    wh_a_ref, wh_b_ref, bhead_ref,                     # head (bhead in SMEM)
    out_ref,                                           # [fused_a|fused_b|pred]
):
    f32 = jnp.float32
    bf16 = jnp.bfloat16
    Fp = bfus_ref.shape[-1]

    # ---- branch a: only TEXT present -> _encode_image path -------------------
    # packed projector: [text2image | text2graph]  ->  proj_a = [img_a | grf_a]
    xt = xt_ref[...]                                       # (TB, Dt) bf16
    proj_a = jax.nn.relu(
        jnp.dot(xt, wp_a_ref[...], preferred_element_type=f32) + bp_a_ref[...])
    # fusion on (graph, image, text), concat-free: fusion weight rows were
    # re-ordered on the host to match the packed projector column order.
    fused_a = jax.nn.relu(
        jnp.dot(proj_a.astype(bf16), wf_a_ref[...], preferred_element_type=f32)
        + jnp.dot(xt, wf_t_ref[...], preferred_element_type=f32)
        + bfus_ref[...])
    out_ref[:, 0:Fp] = fused_a                             # 128-aligned store
    head_a = jnp.sum(fused_a * wh_a_ref[...], axis=-1, keepdims=True)

    # ---- branch b: only IMAGE present -> _encode_text path -------------------
    # packed projector: [image2text | image2graph] ->  proj_b = [txt_b | grf_b]
    yi = yi_ref[...]                                       # (TB, Di) bf16
    proj_b = jax.nn.relu(
        jnp.dot(yi, wp_b_ref[...], preferred_element_type=f32) + bp_b_ref[...])
    fused_b = jax.nn.relu(
        jnp.dot(proj_b.astype(bf16), wf_b_ref[...], preferred_element_type=f32)
        + jnp.dot(yi, wf_i_ref[...], preferred_element_type=f32)
        + bfus_ref[...])
    out_ref[:, Fp:2 * Fp] = fused_b                        # 128-aligned store

    # ---- head: Dropout identity (eval), Linear(2F -> 1) as VPU mul + reduce --
    pred = head_a + jnp.sum(fused_b * wh_b_ref[...], axis=-1, keepdims=True)
    pred = pred + bhead_ref[0, 0]
    lane = jax.lax.broadcasted_iota(jnp.int32, (pred.shape[0], 128), 1)
    out_ref[:, 2 * Fp:2 * Fp + 128] = jnp.where(lane == 0, pred, 0.0)


# -----------------------------------------------------------------------------
# Host-side packing / padding of the PyTorch-style parameters (done once)
# -----------------------------------------------------------------------------
def _round_up(x, m):
    return (x + m - 1) // m * m


def pack_params(p):
    bf16 = jnp.bfloat16
    Dt = p["wt2i"].shape[0]
    Di = p["wt2i"].shape[1]
    Dg = p["wt2g"].shape[1]
    F = p["bfus"].shape[-1]

    Fp = _round_up(F, 128)              # lane-aligned fusion output width
    Pa = _round_up(Di + Dg, 128)        # packed projector width, branch a
    Pb = _round_up(Dt + Dg, 128)        # packed projector width, branch b

    wfus_grf = p["wfus"][:Dg]
    wfus_img = p["wfus"][Dg:Dg + Di]
    wfus_txt = p["wfus"][Dg + Di:]

    def pad_cols(a, n):
        return jnp.pad(a, [(0, 0)] * (a.ndim - 1) + [(0, n - a.shape[-1])])

    def pad_rows(a, n):
        return jnp.pad(a, [(0, n - a.shape[0])] + [(0, 0)] * (a.ndim - 1))

    packed = {
        # packed projectors (branch a: text input; branch b: image input)
        "wp_a": pad_cols(jnp.concatenate([p["wt2i"], p["wt2g"]], 1), Pa).astype(bf16),
        "bp_a": pad_cols(jnp.concatenate([p["bt2i"], p["bt2g"]], 1), Pa),
        "wp_b": pad_cols(jnp.concatenate([p["wi2t"], p["wi2g"]], 1), Pb).astype(bf16),
        "bp_b": pad_cols(jnp.concatenate([p["bi2t"], p["bi2g"]], 1), Pb),
        # fusion weight, row-reordered to match packed projector column order,
        # zero rows for the packed-width padding, zero cols for the F padding
        "wf_a": pad_cols(pad_rows(jnp.concatenate([wfus_img, wfus_grf], 0), Pa), Fp).astype(bf16),
        "wf_t": pad_cols(wfus_txt, Fp).astype(bf16),
        "wf_b": pad_cols(pad_rows(jnp.concatenate([wfus_txt, wfus_grf], 0), Pb), Fp).astype(bf16),
        "wf_i": pad_cols(wfus_img, Fp).astype(bf16),
        "bfus": pad_cols(p["bfus"], Fp),
        # head split into the fused_a / fused_b halves, as (1, Fp) row vectors
        "wh_a": pad_cols(p["whead"][:F].T, Fp),
        "wh_b": pad_cols(p["whead"][F:].T, Fp),
        "bhead": p["bhead"],
    }
    meta = {"F": F, "Fp": Fp, "Pa": Pa, "Pb": Pb}
    return packed, meta


_WEIGHT_KEYS = ("wp_a", "bp_a", "wp_b", "bp_b",
                "wf_a", "wf_t", "wf_b", "wf_i", "bfus", "wh_a", "wh_b")
_WEIGHT_SINGLE_BUFFER = None   # probed on first call: pl.Buffered(1) support


def _vmem_capacity_bytes():
    try:
        return int(pltpu.get_tpu_info().vmem_capacity_bytes)
    except Exception:
        return 64 * 1024 * 1024        # conservative (v7x per-TC)


def _choose_tile_b(B, requested, per_row_bytes, resident_weight_bytes, vmem_budget):
    tb = min(requested, B)
    if B >= 32:
        # at least two grid steps so ("parallel",) can shard over v7x's 2 TCs
        tb = min(tb, _round_up((B + 1) // 2, 16))
    if tb != B:
        tb = max(16, tb // 16 * 16)    # bf16 sublane packing: 16 rows / vreg
    # shrink until double-buffered tiles + resident weights fit the budget
    while tb > 16 and resident_weight_bytes + 2 * tb * per_row_bytes > vmem_budget:
        tb -= 16
    return tb


# -----------------------------------------------------------------------------
# Wrapper
# -----------------------------------------------------------------------------
def complete_artwork_siamese_forward(x_text, y_image, packed, meta, *, tile_b=256):
    """Fused forward pass. Returns (pred (B,1), fused_a (B,F), fused_b (B,F))."""
    global _WEIGHT_SINGLE_BUFFER

    B, Dt = x_text.shape
    Di = y_image.shape[1]
    F, Fp = meta["F"], meta["Fp"]
    Pa, Pb = meta["Pa"], meta["Pb"]
    out_w = 2 * Fp + 128               # [fused_a | fused_b | pred-slab]

    # bf16 activations at the pallas_call boundary: halves input DMA bytes
    x_bf = x_text.astype(jnp.bfloat16)
    y_bf = y_image.astype(jnp.bfloat16)

    weight_bytes = sum(int(packed[k].size) * packed[k].dtype.itemsize
                       for k in _WEIGHT_KEYS)
    # bf16 inputs + f32 output + live f32 intermediates, per batch row
    per_row_bytes = (Dt + Di) * 2 + out_w * 4 + (Pa + Pb + 2 * Fp) * 4
    vmem_cap = _vmem_capacity_bytes()
    tb = _choose_tile_b(B, tile_b, per_row_bytes, 2 * weight_bytes,
                        int(0.7 * vmem_cap))
    grid = (pl.cdiv(B, tb),)

    flops = 2 * B * (Dt * Pa + Di * Pb + (Pa + Dt) * Fp + (Pb + Di) * Fp + 2 * Fp)
    bytes_accessed = int(weight_bytes + B * (Dt + Di) * 2 + B * out_w * 4)
    cost = pl.CostEstimate(flops=int(flops), transcendentals=0,
                           bytes_accessed=bytes_accessed)

    def run(single_buffer_weights):
        def weight_spec(arr):
            if single_buffer_weights:
                # grid-invariant weights: one resident copy instead of the
                # default double buffer (halves their VMEM footprint)
                return pl.BlockSpec(arr.shape, lambda i: (0, 0),
                                    pipeline_mode=pl.Buffered(1))
            return pl.BlockSpec(arr.shape, lambda i: (0, 0))

        def batched(d):
            return pl.BlockSpec((tb, d), lambda i: (i, 0))

        in_specs = [
            batched(Dt), batched(Di),
            weight_spec(packed["wp_a"]), weight_spec(packed["bp_a"]),
            weight_spec(packed["wp_b"]), weight_spec(packed["bp_b"]),
            weight_spec(packed["wf_a"]), weight_spec(packed["wf_t"]),
            weight_spec(packed["wf_b"]), weight_spec(packed["wf_i"]),
            weight_spec(packed["bfus"]),
            weight_spec(packed["wh_a"]), weight_spec(packed["wh_b"]),
            pl.BlockSpec(memory_space=pltpu.MemorySpace.SMEM),   # bhead scalar
        ]

        resident = weight_bytes * (1 if single_buffer_weights else 2)
        need = resident + 2 * tb * ((Dt + Di) * 2 + out_w * 4) + (4 << 20)
        vmem_limit = int(min(max(need * 5 // 4, 32 << 20), vmem_cap))

        return pl.pallas_call(
            _siamese_kernel,
            grid=grid,
            in_specs=in_specs,
            out_specs=pl.BlockSpec((tb, out_w), lambda i: (i, 0)),
            out_shape=jax.ShapeDtypeStruct((B, out_w), jnp.float32),
            compiler_params=pltpu.CompilerParams(
                dimension_semantics=("parallel",),
                vmem_limit_bytes=vmem_limit),
            cost_estimate=cost,
        )(
            x_bf, y_bf,
            packed["wp_a"], packed["bp_a"], packed["wp_b"], packed["bp_b"],
            packed["wf_a"], packed["wf_t"], packed["wf_b"], packed["wf_i"],
            packed["bfus"], packed["wh_a"], packed["wh_b"], packed["bhead"],
        )

    modes = ([True, False] if _WEIGHT_SINGLE_BUFFER is None
             else [_WEIGHT_SINGLE_BUFFER])
    out, err = None, None
    for sb in modes:
        try:
            out = jax.block_until_ready(run(sb))
            _WEIGHT_SINGLE_BUFFER = sb
            break
        except Exception as e:   # pl.Buffered(1) unsupported -> double-buffered
            err = e
    if out is None:
        raise err

    pred = out[:, 2 * Fp:2 * Fp + 1]
    fused_a = out[:, 0:F]
    fused_b = out[:, Fp:Fp + F]
    return pred, fused_a, fused_b


# -----------------------------------------------------------------------------
# Pure-JAX reference mirroring the PyTorch forward semantics
# (bf16 at the MXU boundary, f32 accumulation -- same as the kernel)
# -----------------------------------------------------------------------------
def _reference_forward(x_text, y_image, p):
    relu = jax.nn.relu
    f32, bf16 = jnp.float32, jnp.bfloat16

    def mm(a, w):
        return jnp.dot(a.astype(bf16).astype(f32), w.astype(bf16).astype(f32))

    # branch a (_encode_image)
    img_a = relu(mm(x_text, p["wt2i"]) + p["bt2i"])
    grf_a = relu(mm(x_text, p["wt2g"]) + p["bt2g"])
    txt_a = x_text
    # branch b (_encode_text)
    txt_b = relu(mm(y_image, p["wi2t"]) + p["bi2t"])
    grf_b = relu(mm(y_image, p["wi2g"]) + p["bi2g"])
    img_b = y_image
    # fusion on sorted keys -> (graph, image, text)
    fused_a = relu(mm(jnp.concatenate([grf_a, img_a, txt_a], -1), p["wfus"]) + p["bfus"])
    fused_b = relu(mm(jnp.concatenate([grf_b, img_b, txt_b], -1), p["wfus"]) + p["bfus"])
    shared = jnp.concatenate([fused_a, fused_b], -1)
    pred = shared @ p["whead"] + p["bhead"]
    return pred, fused_a, fused_b


def init_params(key, Dt, Di, Dg, F):
    ks = jax.random.split(key, 12)
    n = lambda k, s: (0.05 * jax.random.normal(k, s)).astype(jnp.float32)
    cat_dim = Dg + Di + Dt
    return {
        "wt2i": n(ks[0], (Dt, Di)),  "bt2i": n(ks[1], (1, Di)),
        "wt2g": n(ks[2], (Dt, Dg)),  "bt2g": n(ks[3], (1, Dg)),
        "wi2t": n(ks[4], (Di, Dt)),  "bi2t": n(ks[5], (1, Dt)),
        "wi2g": n(ks[6], (Di, Dg)),  "bi2g": n(ks[7], (1, Dg)),
        "wfus": n(ks[8], (cat_dim, F)), "bfus": n(ks[9], (1, F)),
        "whead": n(ks[10], (2 * F, 1)), "bhead": n(ks[11], (1, 1)),
    }


def _run_case(key, B, Dt, Di, Dg, F):
    k_x, k_y, k_p = jax.random.split(key, 3)
    x_text = jax.random.normal(k_x, (B, Dt), dtype=jnp.float32)   # x = {"text": ...}
    y_image = jax.random.normal(k_y, (B, Di), dtype=jnp.float32)  # y = {"image": ...}
    params = init_params(k_p, Dt, Di, Dg, F)
    packed, meta = pack_params(params)

    pred, fused_a, fused_b = complete_artwork_siamese_forward(
        x_text, y_image, packed, meta)
    jax.block_until_ready((pred, fused_a, fused_b))

    ref_pred, ref_fa, ref_fb = _reference_forward(x_text, y_image, params)
    assert pred.shape == (B, 1)
    assert jnp.allclose(pred, ref_pred, atol=2e-3, rtol=2e-3), "pred mismatch"
    assert jnp.allclose(fused_a, ref_fa, atol=2e-3, rtol=2e-3), "fused_a mismatch"
    assert jnp.allclose(fused_b, ref_fb, atol=2e-3, rtol=2e-3), "fused_b mismatch"


if __name__ == "__main__":
    key = jax.random.PRNGKey(0)
    k1, k2 = jax.random.split(key)
    # small canonical case (single grid step)
    _run_case(k1, B=8, Dt=32, Di=32, Dg=32, F=32)
    # multi-step grid (2 batch tiles, partial last tile) + uneven dims
    _run_case(k2, B=48, Dt=64, Di=48, Dg=40, F=96)
    print("KERNEL_OK")
</pallas_src>

<mosaic_0001>
module attributes {stable_mosaic.version = 11 : i64} {
  func.func @_siamese_kernel(%arg0: i32, %arg1: memref<8x32xbf16, #tpu.memory_space<vmem>>, %arg2: memref<8x32xbf16, #tpu.memory_space<vmem>>, %arg3: memref<32x128xbf16, #tpu.memory_space<vmem>>, %arg4: memref<1x128xf32, #tpu.memory_space<vmem>>, %arg5: memref<32x128xbf16, #tpu.memory_space<vmem>>, %arg6: memref<1x128xf32, #tpu.memory_space<vmem>>, %arg7: memref<128x128xbf16, #tpu.memory_space<vmem>>, %arg8: memref<32x128xbf16, #tpu.memory_space<vmem>>, %arg9: memref<128x128xbf16, #tpu.memory_space<vmem>>, %arg10: memref<32x128xbf16, #tpu.memory_space<vmem>>, %arg11: memref<1x128xf32, #tpu.memory_space<vmem>>, %arg12: memref<1x128xf32, #tpu.memory_space<vmem>>, %arg13: memref<1x128xf32, #tpu.memory_space<vmem>>, %arg14: memref<1x1xf32, #tpu.memory_space<smem>>, %arg15: memref<8x384xf32, #tpu.memory_space<vmem>>) attributes {dimension_semantics = [#tpu.dimension_semantics<parallel>], iteration_bounds = array<i64: 1>, scalar_prefetch = 0 : i64, scratch_operands = 0 : i64, tpu.core_type = #tpu.core_type<tc>, window_params = [{transform_indices = @transform_0, window_bounds = array<i64: 8, 32>}, {transform_indices = @transform_1, window_bounds = array<i64: 8, 32>}, {pipeline_mode = #tpu.pipeline_mode<synchronous>, transform_indices = @transform_2, window_bounds = array<i64: 32, 128>}, {pipeline_mode = #tpu.pipeline_mode<synchronous>, transform_indices = @transform_3, window_bounds = array<i64: 1, 128>}, {pipeline_mode = #tpu.pipeline_mode<synchronous>, transform_indices = @transform_4, window_bounds = array<i64: 32, 128>}, {pipeline_mode = #tpu.pipeline_mode<synchronous>, transform_indices = @transform_5, window_bounds = array<i64: 1, 128>}, {pipeline_mode = #tpu.pipeline_mode<synchronous>, transform_indices = @transform_6, window_bounds = array<i64: 128, 128>}, {pipeline_mode = #tpu.pipeline_mode<synchronous>, transform_indices = @transform_7, window_bounds = array<i64: 32, 128>}, {pipeline_mode = #tpu.pipeline_mode<synchronous>, transform_indices = @transform_8, window_bounds = array<i64: 128, 128>}, {pipeline_mode = #tpu.pipeline_mode<synchronous>, transform_indices = @transform_9, window_bounds = array<i64: 32, 128>}, {pipeline_mode = #tpu.pipeline_mode<synchronous>, transform_indices = @transform_10, window_bounds = array<i64: 1, 128>}, {pipeline_mode = #tpu.pipeline_mode<synchronous>, transform_indices = @transform_11, window_bounds = array<i64: 1, 128>}, {pipeline_mode = #tpu.pipeline_mode<synchronous>, transform_indices = @transform_12, window_bounds = array<i64: 1, 128>}, {transform_indices = @transform_13, window_bounds = array<i64: 1, 1>}, {transform_indices = @transform_14, window_bounds = array<i64: 8, 384>}]} {
    %c0 = arith.constant 0 : index
    %c0_0 = arith.constant 0 : index
    %0 = vector.load %arg1[%c0, %c0_0] : memref<8x32xbf16, #tpu.memory_space<vmem>>, vector<8x32xbf16>
    %c0_1 = arith.constant 0 : index
    %c0_2 = arith.constant 0 : index
    %1 = vector.load %arg3[%c0_1, %c0_2] : memref<32x128xbf16, #tpu.memory_space<vmem>>, vector<32x128xbf16>
    %cst = arith.constant dense<0.000000e+00> : vector<8x128xf32>
    %2 = tpu.matmul %0, %1, %cst {dimension_numbers = #tpu.dot_dimension_numbers<[1], [0], [0], [1], [0, 0, 1, 1], [], []>} : vector<8x32xbf16>, vector<32x128xbf16>, vector<8x128xf32> -> vector<8x128xf32>
    %c0_3 = arith.constant 0 : index
    %c0_4 = arith.constant 0 : index
    %3 = vector.load %arg4[%c0_3, %c0_4] : memref<1x128xf32, #tpu.memory_space<vmem>>, vector<1x128xf32>
    %4 = vector.broadcast %3 : vector<1x128xf32> to vector<8x128xf32>
    %5 = arith.addf %2, %4 : vector<8x128xf32>
    %cst_5 = arith.constant 0.000000e+00 : f32
    %6 = vector.broadcast %cst_5 : f32 to vector<8x128xf32>
    %7 = arith.maximumf %5, %6 : vector<8x128xf32>
    %8 = arith.truncf %7 : vector<8x128xf32> to vector<8x128xbf16>
    %c0_6 = arith.constant 0 : index
    %c0_7 = arith.constant 0 : index
    %9 = vector.load %arg7[%c0_6, %c0_7] : memref<128x128xbf16, #tpu.memory_space<vmem>>, vector<128x128xbf16>
    %cst_8 = arith.constant dense<0.000000e+00> : vector<8x128xf32>
    %10 = tpu.matmul %8, %9, %cst_8 {dimension_numbers = #tpu.dot_dimension_numbers<[1], [0], [0], [1], [0, 0, 1, 1], [], []>} : vector<8x128xbf16>, vector<128x128xbf16>, vector<8x128xf32> -> vector<8x128xf32>
    %c0_9 = arith.constant 0 : index
    %c0_10 = arith.constant 0 : index
    %11 = vector.load %arg8[%c0_9, %c0_10] : memref<32x128xbf16, #tpu.memory_space<vmem>>, vector<32x128xbf16>
    %cst_11 = arith.constant dense<0.000000e+00> : vector<8x128xf32>
    %12 = tpu.matmul %0, %11, %cst_11 {dimension_numbers = #tpu.dot_dimension_numbers<[1], [0], [0], [1], [0, 0, 1, 1], [], []>} : vector<8x32xbf16>, vector<32x128xbf16>, vector<8x128xf32> -> vector<8x128xf32>
    %13 = arith.addf %10, %12 : vector<8x128xf32>
    %c0_12 = arith.constant 0 : index
    %c0_13 = arith.constant 0 : index
    %14 = vector.load %arg11[%c0_12, %c0_13] : memref<1x128xf32, #tpu.memory_space<vmem>>, vector<1x128xf32>
    %15 = vector.broadcast %14 : vector<1x128xf32> to vector<8x128xf32>
    %16 = arith.addf %13, %15 : vector<8x128xf32>
    %cst_14 = arith.constant 0.000000e+00 : f32
    %17 = vector.broadcast %cst_14 : f32 to vector<8x128xf32>
    %18 = arith.maximumf %16, %17 : vector<8x128xf32>
    %c0_15 = arith.constant 0 : index
    %c0_16 = arith.constant 0 : index
    %19 = vector.load %arg15[%c0_15, %c0_16] : memref<8x384xf32, #tpu.memory_space<vmem>>, vector<8x128xf32>
    tpu.vector_store %arg15[%c0_15, %c0_16], %18 {strides = array<i32>} : memref<8x384xf32, #tpu.memory_space<vmem>>, vector<8x128xf32>,
    %c0_17 = arith.constant 0 : index
    %c0_18 = arith.constant 0 : index
    %20 = vector.load %arg12[%c0_17, %c0_18] : memref<1x128xf32, #tpu.memory_space<vmem>>, vector<1x128xf32>
    %21 = vector.broadcast %20 : vector<1x128xf32> to vector<8x128xf32>
    %22 = arith.mulf %18, %21 : vector<8x128xf32>
    %cst_19 = arith.constant dense<0.000000e+00> : vector<8xf32>
    %23 = vector.multi_reduction <add>, %22, %cst_19 [1] : vector<8x128xf32> to vector<8xf32>
    %24 = vector.shape_cast %23 : vector<8xf32> to vector<8x1xf32>
    %c0_20 = arith.constant 0 : index
    %c0_21 = arith.constant 0 : index
    %25 = vector.load %arg2[%c0_20, %c0_21] : memref<8x32xbf16, #tpu.memory_space<vmem>>, vector<8x32xbf16>
    %c0_22 = arith.constant 0 : index
    %c0_23 = arith.constant 0 : index
    %26 = vector.load %arg5[%c0_22, %c0_23] : memref<32x128xbf16, #tpu.memory_space<vmem>>, vector<32x128xbf16>
    %cst_24 = arith.constant dense<0.000000e+00> : vector<8x128xf32>
    %27 = tpu.matmul %25, %26, %cst_24 {dimension_numbers = #tpu.dot_dimension_numbers<[1], [0], [0], [1], [0, 0, 1, 1], [], []>} : vector<8x32xbf16>, vector<32x128xbf16>, vector<8x128xf32> -> vector<8x128xf32>
    %c0_25 = arith.constant 0 : index
    %c0_26 = arith.constant 0 : index
    %28 = vector.load %arg6[%c0_25, %c0_26] : memref<1x128xf32, #tpu.memory_space<vmem>>, vector<1x128xf32>
    %29 = vector.broadcast %28 : vector<1x128xf32> to vector<8x128xf32>
    %30 = arith.addf %27, %29 : vector<8x128xf32>
    %cst_27 = arith.constant 0.000000e+00 : f32
    %31 = vector.broadcast %cst_27 : f32 to vector<8x128xf32>
    %32 = arith.maximumf %30, %31 : vector<8x128xf32>
    %33 = arith.truncf %32 : vector<8x128xf32> to vector<8x128xbf16>
    %c0_28 = arith.constant 0 : index
    %c0_29 = arith.constant 0 : index
    %34 = vector.load %arg9[%c0_28, %c0_29] : memref<128x128xbf16, #tpu.memory_space<vmem>>, vector<128x128xbf16>
    %cst_30 = arith.constant dense<0.000000e+00> : vector<8x128xf32>
    %35 = tpu.matmul %33, %34, %cst_30 {dimension_numbers = #tpu.dot_dimension_numbers<[1], [0], [0], [1], [0, 0, 1, 1], [], []>} : vector<8x128xbf16>, vector<128x128xbf16>, vector<8x128xf32> -> vector<8x128xf32>
    %c0_31 = arith.constant 0 : index
    %c0_32 = arith.constant 0 : index
    %36 = vector.load %arg10[%c0_31, %c0_32] : memref<32x128xbf16, #tpu.memory_space<vmem>>, vector<32x128xbf16>
    %cst_33 = arith.constant dense<0.000000e+00> : vector<8x128xf32>
    %37 = tpu.matmul %25, %36, %cst_33 {dimension_numbers = #tpu.dot_dimension_numbers<[1], [0], [0], [1], [0, 0, 1, 1], [], []>} : vector<8x32xbf16>, vector<32x128xbf16>, vector<8x128xf32> -> vector<8x128xf32>
    %38 = arith.addf %35, %37 : vector<8x128xf32>
    %c0_34 = arith.constant 0 : index
    %c0_35 = arith.constant 0 : index
    %39 = vector.load %arg11[%c0_34, %c0_35] : memref<1x128xf32, #tpu.memory_space<vmem>>, vector<1x128xf32>
    %40 = vector.broadcast %39 : vector<1x128xf32> to vector<8x128xf32>
    %41 = arith.addf %38, %40 : vector<8x128xf32>
    %cst_36 = arith.constant 0.000000e+00 : f32
    %42 = vector.broadcast %cst_36 : f32 to vector<8x128xf32>
    %43 = arith.maximumf %41, %42 : vector<8x128xf32>
    %c0_37 = arith.constant 0 : index
    %c128 = arith.constant 128 : index
    %44 = vector.load %arg15[%c0_37, %c128] : memref<8x384xf32, #tpu.memory_space<vmem>>, vector<8x128xf32>
    tpu.vector_store %arg15[%c0_37, %c128], %43 {strides = array<i32>} : memref<8x384xf32, #tpu.memory_space<vmem>>, vector<8x128xf32>,
    %c0_38 = arith.constant 0 : index
    %c0_39 = arith.constant 0 : index
    %45 = vector.load %arg13[%c0_38, %c0_39] : memref<1x128xf32, #tpu.memory_space<vmem>>, vector<1x128xf32>
    %46 = vector.broadcast %45 : vector<1x128xf32> to vector<8x128xf32>
    %47 = arith.mulf %43, %46 : vector<8x128xf32>
    %cst_40 = arith.constant dense<0.000000e+00> : vector<8xf32>
    %48 = vector.multi_reduction <add>, %47, %cst_40 [1] : vector<8x128xf32> to vector<8xf32>
    %49 = vector.shape_cast %48 : vector<8xf32> to vector<8x1xf32>
    %50 = arith.addf %24, %49 : vector<8x1xf32>
    %c0_41 = arith.constant 0 : index
    %c0_42 = arith.constant 0 : index
    %51 = memref.load %arg14[%c0_41, %c0_42] : memref<1x1xf32, #tpu.memory_space<smem>>
    %52 = vector.broadcast %51 : f32 to vector<8x1xf32>
    %53 = arith.addf %50, %52 : vector<8x1xf32>
    %54 = tpu.iota {dimensions = array<i32: 1>} : vector<8x128xi32>
    %c0_i32 = arith.constant 0 : i32
    %55 = vector.broadcast %c0_i32 : i32 to vector<8x128xi32>
    %56 = arith.cmpi eq, %54, %55 : vector<8x128xi32>
    %cst_43 = arith.constant 0.000000e+00 : f32
    %57 = vector.shape_cast %53 : vector<8x1xf32> to vector<8x1xf32>
    %58 = vector.broadcast %57 : vector<8x1xf32> to vector<8x128xf32>
    %59 = vector.broadcast %cst_43 : f32 to vector<8x128xf32>
    %60 = arith.select %56, %58, %59 : vector<8x128xi1>, vector<8x128xf32>
    %c0_44 = arith.constant 0 : index
    %c256 = arith.constant 256 : index
    %61 = vector.load %arg15[%c0_44, %c256] : memref<8x384xf32, #tpu.memory_space<vmem>>, vector<8x128xf32>
    tpu.vector_store %arg15[%c0_44, %c256], %60 {strides = array<i32>} : memref<8x384xf32, #tpu.memory_space<vmem>>, vector<8x128xf32>,
    return
  }
  func.func @transform_0(%arg0: i32) -> (i32, i32) {
    %c0_i32 = arith.constant 0 : i32
    %c0_i32_0 = arith.constant 0 : i32
    return %arg0, %c0_i32 : i32, i32
  }
  func.func @transform_1(%arg0: i32) -> (i32, i32) {
    %c0_i32 = arith.constant 0 : i32
    %c0_i32_0 = arith.constant 0 : i32
    return %arg0, %c0_i32 : i32, i32
  }
  func.func @transform_2(%arg0: i32) -> (i32, i32) {
    %c0_i32 = arith.constant 0 : i32
    %c0_i32_0 = arith.constant 0 : i32
    %c0_i32_1 = arith.constant 0 : i32
    return %c0_i32, %c0_i32_0 : i32, i32
  }
  func.func @transform_3(%arg0: i32) -> (i32, i32) {
    %c0_i32 = arith.constant 0 : i32
    %c0_i32_0 = arith.constant 0 : i32
    %c0_i32_1 = arith.constant 0 : i32
    return %c0_i32, %c0_i32_0 : i32, i32
  }
  func.func @transform_4(%arg0: i32) -> (i32, i32) {
    %c0_i32 = arith.constant 0 : i32
    %c0_i32_0 = arith.constant 0 : i32
    %c0_i32_1 = arith.constant 0 : i32
    return %c0_i32, %c0_i32_0 : i32, i32
  }
  func.func @transform_5(%arg0: i32) -> (i32, i32) {
    %c0_i32 = arith.constant 0 : i32
    %c0_i32_0 = arith.constant 0 : i32
    %c0_i32_1 = arith.constant 0 : i32
    return %c0_i32, %c0_i32_0 : i32, i32
  }
  func.func @transform_6(%arg0: i32) -> (i32, i32) {
    %c0_i32 = arith.constant 0 : i32
    %c0_i32_0 = arith.constant 0 : i32
    %c0_i32_1 = arith.constant 0 : i32
    return %c0_i32, %c0_i32_0 : i32, i32
  }
  func.func @transform_7(%arg0: i32) -> (i32, i32) {
    %c0_i32 = arith.constant 0 : i32
    %c0_i32_0 = arith.constant 0 : i32
    %c0_i32_1 = arith.constant 0 : i32
    return %c0_i32, %c0_i32_0 : i32, i32
  }
  func.func @transform_8(%arg0: i32) -> (i32, i32) {
    %c0_i32 = arith.constant 0 : i32
    %c0_i32_0 = arith.constant 0 : i32
    %c0_i32_1 = arith.constant 0 : i32
    return %c0_i32, %c0_i32_0 : i32, i32
  }
  func.func @transform_9(%arg0: i32) -> (i32, i32) {
    %c0_i32 = arith.constant 0 : i32
    %c0_i32_0 = arith.constant 0 : i32
    %c0_i32_1 = arith.constant 0 : i32
    return %c0_i32, %c0_i32_0 : i32, i32
  }
  func.func @transform_10(%arg0: i32) -> (i32, i32) {
    %c0_i32 = arith.constant 0 : i32
    %c0_i32_0 = arith.constant 0 : i32
    %c0_i32_1 = arith.constant 0 : i32
    return %c0_i32, %c0_i32_0 : i32, i32
  }
  func.func @transform_11(%arg0: i32) -> (i32, i32) {
    %c0_i32 = arith.constant 0 : i32
    %c0_i32_0 = arith.constant 0 : i32
    %c0_i32_1 = arith.constant 0 : i32
    return %c0_i32, %c0_i32_0 : i32, i32
  }
  func.func @transform_12(%arg0: i32) -> (i32, i32) {
    %c0_i32 = arith.constant 0 : i32
    %c0_i32_0 = arith.constant 0 : i32
    %c0_i32_1 = arith.constant 0 : i32
    return %c0_i32, %c0_i32_0 : i32, i32
  }
  func.func @transform_13(%arg0: i32) -> (i32, i32) {
    %c0_i32 = arith.constant 0 : i32
    %c0_i32_0 = arith.constant 0 : i32
    %c0_i32_1 = arith.constant 0 : i32
    return %c0_i32, %c0_i32_0 : i32, i32
  }
  func.func @transform_14(%arg0: i32) -> (i32, i32) {
    %c0_i32 = arith.constant 0 : i32
    %c0_i32_0 = arith.constant 0 : i32
    return %arg0, %c0_i32 : i32, i32
  }
}

module attributes {stable_mosaic.version = 11 : i64} {
  func.func @_siamese_kernel(%arg0: i32, %arg1: memref<8x32xbf16, #tpu.memory_space<vmem>>, %arg2: memref<8x32xbf16, #tpu.memory_space<vmem>>, %arg3: memref<32x128xbf16, #tpu.memory_space<vmem>>, %arg4: memref<1x128xf32, #tpu.memory_space<vmem>>, %arg5: memref<32x128xbf16, #tpu.memory_space<vmem>>, %arg6: memref<1x128xf32, #tpu.memory_space<vmem>>, %arg7: memref<128x128xbf16, #tpu.memory_space<vmem>>, %arg8: memref<32x128xbf16, #tpu.memory_space<vmem>>, %arg9: memref<128x128xbf16, #tpu.memory_space<vmem>>, %arg10: memref<32x128xbf16, #tpu.memory_space<vmem>>, %arg11: memref<1x128xf32, #tpu.memory_space<vmem>>, %arg12: memref<1x128xf32, #tpu.memory_space<vmem>>, %arg13: memref<1x128xf32, #tpu.memory_space<vmem>>, %arg14: memref<1x1xf32, #tpu.memory_space<smem>>, %arg15: memref<8x384xf32, #tpu.memory_space<vmem>>) attributes {dimension_semantics = [#tpu.dimension_semantics<parallel>], iteration_bounds = array<i64: 1>, scalar_prefetch = 0 : i64, scratch_operands = 0 : i64, tpu.core_type = #tpu.core_type<tc>, window_params = [{transform_indices = @transform_0, window_bounds = array<i64: 8, 32>}, {transform_indices = @transform_1, window_bounds = array<i64: 8, 32>}, {pipeline_mode = #tpu.pipeline_mode<synchronous>, transform_indices = @transform_2, window_bounds = array<i64: 32, 128>}, {pipeline_mode = #tpu.pipeline_mode<synchronous>, transform_indices = @transform_3, window_bounds = array<i64: 1, 128>}, {pipeline_mode = #tpu.pipeline_mode<synchronous>, transform_indices = @transform_4, window_bounds = array<i64: 32, 128>}, {pipeline_mode = #tpu.pipeline_mode<synchronous>, transform_indices = @transform_5, window_bounds = array<i64: 1, 128>}, {pipeline_mode = #tpu.pipeline_mode<synchronous>, transform_indices = @transform_6, window_bounds = array<i64: 128, 128>}, {pipeline_mode = #tpu.pipeline_mode<synchronous>, transform_indices = @transform_7, window_bounds = array<i64: 32, 128>}, {pipeline_mode = #tpu.pipeline_mode<synchronous>, transform_indices = @transform_8, window_bounds = array<i64: 128, 128>}, {pipeline_mode = #tpu.pipeline_mode<synchronous>, transform_indices = @transform_9, window_bounds = array<i64: 32, 128>}, {pipeline_mode = #tpu.pipeline_mode<synchronous>, transform_indices = @transform_10, window_bounds = array<i64: 1, 128>}, {pipeline_mode = #tpu.pipeline_mode<synchronous>, transform_indices = @transform_11, window_bounds = array<i64: 1, 128>}, {pipeline_mode = #tpu.pipeline_mode<synchronous>, transform_indices = @transform_12, window_bounds = array<i64: 1, 128>}, {transform_indices = @transform_13, window_bounds = array<i64: 1, 1>}, {transform_indices = @transform_14, window_bounds = array<i64: 8, 384>}]} {
    %c0 = arith.constant 0 : index
    %c0_0 = arith.constant 0 : index
    %0 = vector.load %arg1[%c0, %c0_0] : memref<8x32xbf16, #tpu.memory_space<vmem>>, vector<8x32xbf16>
    %c0_1 = arith.constant 0 : index
    %c0_2 = arith.constant 0 : index
    %1 = vector.load %arg3[%c0_1, %c0_2] : memref<32x128xbf16, #tpu.memory_space<vmem>>, vector<32x128xbf16>
    %cst = arith.constant dense<0.000000e+00> : vector<8x128xf32>
    %2 = tpu.matmul %0, %1, %cst {dimension_numbers = #tpu.dot_dimension_numbers<[1], [0], [0], [1], [0, 0, 1, 1], [], []>} : vector<8x32xbf16>, vector<32x128xbf16>, vector<8x128xf32> -> vector<8x128xf32>
    %c0_3 = arith.constant 0 : index
    %c0_4 = arith.constant 0 : index
    %3 = vector.load %arg4[%c0_3, %c0_4] : memref<1x128xf32, #tpu.memory_space<vmem>>, vector<1x128xf32>
    %4 = vector.broadcast %3 : vector<1x128xf32> to vector<8x128xf32>
    %5 = arith.addf %2, %4 : vector<8x128xf32>
    %cst_5 = arith.constant 0.000000e+00 : f32
    %6 = vector.broadcast %cst_5 : f32 to vector<8x128xf32>
    %7 = arith.maximumf %5, %6 : vector<8x128xf32>
    %8 = arith.truncf %7 : vector<8x128xf32> to vector<8x128xbf16>
    %c0_6 = arith.constant 0 : index
    %c0_7 = arith.constant 0 : index
    %9 = vector.load %arg7[%c0_6, %c0_7] : memref<128x128xbf16, #tpu.memory_space<vmem>>, vector<128x128xbf16>
    %cst_8 = arith.constant dense<0.000000e+00> : vector<8x128xf32>
    %10 = tpu.matmul %8, %9, %cst_8 {dimension_numbers = #tpu.dot_dimension_numbers<[1], [0], [0], [1], [0, 0, 1, 1], [], []>} : vector<8x128xbf16>, vector<128x128xbf16>, vector<8x128xf32> -> vector<8x128xf32>
    %c0_9 = arith.constant 0 : index
    %c0_10 = arith.constant 0 : index
    %11 = vector.load %arg8[%c0_9, %c0_10] : memref<32x128xbf16, #tpu.memory_space<vmem>>, vector<32x128xbf16>
    %cst_11 = arith.constant dense<0.000000e+00> : vector<8x128xf32>
    %12 = tpu.matmul %0, %11, %cst_11 {dimension_numbers = #tpu.dot_dimension_numbers<[1], [0], [0], [1], [0, 0, 1, 1], [], []>} : vector<8x32xbf16>, vector<32x128xbf16>, vector<8x128xf32> -> vector<8x128xf32>
    %13 = arith.addf %10, %12 : vector<8x128xf32>
    %c0_12 = arith.constant 0 : index
    %c0_13 = arith.constant 0 : index
    %14 = vector.load %arg11[%c0_12, %c0_13] : memref<1x128xf32, #tpu.memory_space<vmem>>, vector<1x128xf32>
    %15 = vector.broadcast %14 : vector<1x128xf32> to vector<8x128xf32>
    %16 = arith.addf %13, %15 : vector<8x128xf32>
    %cst_14 = arith.constant 0.000000e+00 : f32
    %17 = vector.broadcast %cst_14 : f32 to vector<8x128xf32>
    %18 = arith.maximumf %16, %17 : vector<8x128xf32>
    %c0_15 = arith.constant 0 : index
    %c0_16 = arith.constant 0 : index
    %19 = vector.load %arg15[%c0_15, %c0_16] : memref<8x384xf32, #tpu.memory_space<vmem>>, vector<8x128xf32>
    tpu.vector_store %arg15[%c0_15, %c0_16], %18 {strides = array<i32>} : memref<8x384xf32, #tpu.memory_space<vmem>>, vector<8x128xf32>,
    %c0_17 = arith.constant 0 : index
    %c0_18 = arith.constant 0 : index
    %20 = vector.load %arg12[%c0_17, %c0_18] : memref<1x128xf32, #tpu.memory_space<vmem>>, vector<1x128xf32>
    %21 = vector.broadcast %20 : vector<1x128xf32> to vector<8x128xf32>
    %22 = arith.mulf %18, %21 : vector<8x128xf32>
    %cst_19 = arith.constant dense<0.000000e+00> : vector<8xf32>
    %23 = vector.multi_reduction <add>, %22, %cst_19 [1] : vector<8x128xf32> to vector<8xf32>
    %24 = vector.shape_cast %23 : vector<8xf32> to vector<8x1xf32>
    %c0_20 = arith.constant 0 : index
    %c0_21 = arith.constant 0 : index
    %25 = vector.load %arg2[%c0_20, %c0_21] : memref<8x32xbf16, #tpu.memory_space<vmem>>, vector<8x32xbf16>
    %c0_22 = arith.constant 0 : index
    %c0_23 = arith.constant 0 : index
    %26 = vector.load %arg5[%c0_22, %c0_23] : memref<32x128xbf16, #tpu.memory_space<vmem>>, vector<32x128xbf16>
    %cst_24 = arith.constant dense<0.000000e+00> : vector<8x128xf32>
    %27 = tpu.matmul %25, %26, %cst_24 {dimension_numbers = #tpu.dot_dimension_numbers<[1], [0], [0], [1], [0, 0, 1, 1], [], []>} : vector<8x32xbf16>, vector<32x128xbf16>, vector<8x128xf32> -> vector<8x128xf32>
    %c0_25 = arith.constant 0 : index
    %c0_26 = arith.constant 0 : index
    %28 = vector.load %arg6[%c0_25, %c0_26] : memref<1x128xf32, #tpu.memory_space<vmem>>, vector<1x128xf32>
    %29 = vector.broadcast %28 : vector<1x128xf32> to vector<8x128xf32>
    %30 = arith.addf %27, %29 : vector<8x128xf32>
    %cst_27 = arith.constant 0.000000e+00 : f32
    %31 = vector.broadcast %cst_27 : f32 to vector<8x128xf32>
    %32 = arith.maximumf %30, %31 : vector<8x128xf32>
    %33 = arith.truncf %32 : vector<8x128xf32> to vector<8x128xbf16>
    %c0_28 = arith.constant 0 : index
    %c0_29 = arith.constant 0 : index
    %34 = vector.load %arg9[%c0_28, %c0_29] : memref<128x128xbf16, #tpu.memory_space<vmem>>, vector<128x128xbf16>
    %cst_30 = arith.constant dense<0.000000e+00> : vector<8x128xf32>
    %35 = tpu.matmul %33, %34, %cst_30 {dimension_numbers = #tpu.dot_dimension_numbers<[1], [0], [0], [1], [0, 0, 1, 1], [], []>} : vector<8x128xbf16>, vector<128x128xbf16>, vector<8x128xf32> -> vector<8x128xf32>
    %c0_31 = arith.constant 0 : index
    %c0_32 = arith.constant 0 : index
    %36 = vector.load %arg10[%c0_31, %c0_32] : memref<32x128xbf16, #tpu.memory_space<vmem>>, vector<32x128xbf16>
    %cst_33 = arith.constant dense<0.000000e+00> : vector<8x128xf32>
    %37 = tpu.matmul %25, %36, %cst_33 {dimension_numbers = #tpu.dot_dimension_numbers<[1], [0], [0], [1], [0, 0, 1, 1], [], []>} : vector<8x32xbf16>, vector<32x128xbf16>, vector<8x128xf32> -> vector<8x128xf32>
    %38 = arith.addf %35, %37 : vector<8x128xf32>
    %c0_34 = arith.constant 0 : index
    %c0_35 = arith.constant 0 : index
    %39 = vector.load %arg11[%c0_34, %c0_35] : memref<1x128xf32, #tpu.memory_space<vmem>>, vector<1x128xf32>
    %40 = vector.broadcast %39 : vector<1x128xf32> to vector<8x128xf32>
    %41 = arith.addf %38, %40 : vector<8x128xf32>
    %cst_36 = arith.constant 0.000000e+00 : f32
    %42 = vector.broadcast %cst_36 : f32 to vector<8x128xf32>
    %43 = arith.maximumf %41, %42 : vector<8x128xf32>
    %c0_37 = arith.constant 0 : index
    %c128 = arith.constant 128 : index
    %44 = vector.load %arg15[%c0_37, %c128] : memref<8x384xf32, #tpu.memory_space<vmem>>, vector<8x128xf32>
    tpu.vector_store %arg15[%c0_37, %c128], %43 {strides = array<i32>} : memref<8x384xf32, #tpu.memory_space<vmem>>, vector<8x128xf32>,
    %c0_38 = arith.constant 0 : index
    %c0_39 = arith.constant 0 : index
    %45 = vector.load %arg13[%c0_38, %c0_39] : memref<1x128xf32, #tpu.memory_space<vmem>>, vector<1x128xf32>
    %46 = vector.broadcast %45 : vector<1x128xf32> to vector<8x128xf32>
    %47 = arith.mulf %43, %46 : vector<8x128xf32>
    %cst_40 = arith.constant dense<0.000000e+00> : vector<8xf32>
    %48 = vector.multi_reduction <add>, %47, %cst_40 [1] : vector<8x128xf32> to vector<8xf32>
    %49 = vector.shape_cast %48 : vector<8xf32> to vector<8x1xf32>
    %50 = arith.addf %24, %49 : vector<8x1xf32>
    %c0_41 = arith.constant 0 : index
    %c0_42 = arith.constant 0 : index
    %51 = memref.load %arg14[%c0_41, %c0_42] : memref<1x1xf32, #tpu.memory_space<smem>>
    %52 = vector.broadcast %51 : f32 to vector<8x1xf32>
    %53 = arith.addf %50, %52 : vector<8x1xf32>
    %54 = tpu.iota {dimensions = array<i32: 1>} : vector<8x128xi32>
    %c0_i32 = arith.constant 0 : i32
    %55 = vector.broadcast %c0_i32 : i32 to vector<8x128xi32>
    %56 = arith.cmpi eq, %54, %55 : vector<8x128xi32>
    %cst_43 = arith.constant 0.000000e+00 : f32
    %57 = vector.shape_cast %53 : vector<8x1xf32> to vector<8x1xf32>
    %58 = vector.broadcast %57 : vector<8x1xf32> to vector<8x128xf32>
    %59 = vector.broadcast %cst_43 : f32 to vector<8x128xf32>
    %60 = arith.select %56, %58, %59 : vector<8x128xi1>, vector<8x128xf32>
    %c0_44 = arith.constant 0 : index
    %c256 = arith.constant 256 : index
    %61 = vector.load %arg15[%c0_44, %c256] : memref<8x384xf32, #tpu.memory_space<vmem>>, vector<8x128xf32>
    tpu.vector_store %arg15[%c0_44, %c256], %60 {strides = array<i32>} : memref<8x384xf32, #tpu.memory_space<vmem>>, vector<8x128xf32>,
    return
  }
  func.func @transform_0(%arg0: i32) -> (i32, i32) {
    %c0_i32 = arith.constant 0 : i32
    %c0_i32_0 = arith.constant 0 : i32
    return %arg0, %c0_i32 : i32, i32
  }
  func.func @transform_1(%arg0: i32) -> (i32, i32) {
    %c0_i32 = arith.constant 0 : i32
    %c0_i32_0 = arith.constant 0 : i32
    return %arg0, %c0_i32 : i32, i32
  }
  func.func @transform_2(%arg0: i32) -> (i32, i32) {
    %c0_i32 = arith.constant 0 : i32
    %c0_i32_0 = arith.constant 0 : i32
    %c0_i32_1 = arith.constant 0 : i32
    return %c0_i32, %c0_i32_0 : i32, i32
  }
  func.func @transform_3(%arg0: i32) -> (i32, i32) {
    %c0_i32 = arith.constant 0 : i32
    %c0_i32_0 = arith.constant 0 : i32
    %c0_i32_1 = arith.constant 0 : i32
    return %c0_i32, %c0_i32_0 : i32, i32
  }
  func.func @transform_4(%arg0: i32) -> (i32, i32) {
    %c0_i32 = arith.constant 0 : i32
    %c0_i32_0 = arith.constant 0 : i32
    %c0_i32_1 = arith.constant 0 : i32
    return %c0_i32, %c0_i32_0 : i32, i32
  }
  func.func @transform_5(%arg0: i32) -> (i32, i32) {
    %c0_i32 = arith.constant 0 : i32
    %c0_i32_0 = arith.constant 0 : i32
    %c0_i32_1 = arith.constant 0 : i32
    return %c0_i32, %c0_i32_0 : i32, i32
  }
  func.func @transform_6(%arg0: i32) -> (i32, i32) {
    %c0_i32 = arith.constant 0 : i32
    %c0_i32_0 = arith.constant 0 : i32
    %c0_i32_1 = arith.constant 0 : i32
    return %c0_i32, %c0_i32_0 : i32, i32
  }
  func.func @transform_7(%arg0: i32) -> (i32, i32) {
    %c0_i32 = arith.constant 0 : i32
    %c0_i32_0 = arith.constant 0 : i32
    %c0_i32_1 = arith.constant 0 : i32
    return %c0_i32, %c0_i32_0 : i32, i32
  }
  func.func @transform_8(%arg0: i32) -> (i32, i32) {
    %c0_i32 = arith.constant 0 : i32
    %c0_i32_0 = arith.constant 0 : i32
    %c0_i32_1 = arith.constant 0 : i32
    return %c0_i32, %c0_i32_0 : i32, i32
  }
  func.func @transform_9(%arg0: i32) -> (i32, i32) {
    %c0_i32 = arith.constant 0 : i32
    %c0_i32_0 = arith.constant 0 : i32
    %c0_i32_1 = arith.constant 0 : i32
    return %c0_i32, %c0_i32_0 : i32, i32
  }
  func.func @transform_10(%arg0: i32) -> (i32, i32) {
    %c0_i32 = arith.constant 0 : i32
    %c0_i32_0 = arith.constant 0 : i32
    %c0_i32_1 = arith.constant 0 : i32
    return %c0_i32, %c0_i32_0 : i32, i32
  }
  func.func @transform_11(%arg0: i32) -> (i32, i32) {
    %c0_i32 = arith.constant 0 : i32
    %c0_i32_0 = arith.constant 0 : i32
    %c0_i32_1 = arith.constant 0 : i32
    return %c0_i32, %c0_i32_0 : i32, i32
  }
  func.func @transform_12(%arg0: i32) -> (i32, i32) {
    %c0_i32 = arith.constant 0 : i32
    %c0_i32_0 = arith.constant 0 : i32
    %c0_i32_1 = arith.constant 0 : i32
    return %c0_i32, %c0_i32_0 : i32, i32
  }
  func.func @transform_13(%arg0: i32) -> (i32, i32) {
    %c0_i32 = arith.constant 0 : i32
    %c0_i32_0 = arith.constant 0 : i32
    %c0_i32_1 = arith.constant 0 : i32
    return %c0_i32, %c0_i32_0 : i32, i32
  }
  func.func @transform_14(%arg0: i32) -> (i32, i32) {
    %c0_i32 = arith.constant 0 : i32
    %c0_i32_0 = arith.constant 0 : i32
    return %arg0, %c0_i32 : i32, i32
  }
}

</mosaic_0001>

<llo_original>
// kernel: tpu_custom_call.1
$region0: #{tpu_custom_call.1}
  #allocation0 [shape = 'u32[]', space=smem, size = 0x4, offset = 0x4, fixed_abs, tag = 'smem constant byte address 0x4 - core index']
  #allocation1 [shape = 'u32[144,128]{1,0:T(1,128)}', space=vmem, size = 0x12000, scoped, tag = 'internal scratch']
  #allocation2 [shape = 'f32[1,1]{1,0:T(1,128)S(6)}', space=smem, size = 0x200, scoped, tag = 'scoped memory for tpu_custom_call.1']
  %s0 = inlined_call_operand.hbm [shape: bf16[8,32], index: 0, kind: input, shape index: {}]
  %s1 = inlined_call_operand.hbm [shape: bf16[8,32], index: 1, kind: input, shape index: {}]
  %s2 = inlined_call_operand.hbm [shape: bf16[32,128], index: 2, kind: input, shape index: {}]
  %s3 = inlined_call_operand.vmem [shape: f32[1,128], index: 3, kind: input, shape index: {}]
  %s4 = inlined_call_operand.vmem [shape: bf16[32,128], index: 4, kind: input, shape index: {}]
  %s5 = inlined_call_operand.vmem [shape: f32[1,128], index: 5, kind: input, shape index: {}]
  %s6 = inlined_call_operand.hbm [shape: bf16[128,128], index: 6, kind: input, shape index: {}]
  %s7 = inlined_call_operand.hbm [shape: bf16[32,128], index: 7, kind: input, shape index: {}]
  %s8 = inlined_call_operand.hbm [shape: bf16[128,128], index: 8, kind: input, shape index: {}]
  %s9 = inlined_call_operand.vmem [shape: bf16[32,128], index: 9, kind: input, shape index: {}]
  %s10 = inlined_call_operand.vmem [shape: f32[1,128], index: 10, kind: input, shape index: {}]
  %s11 = inlined_call_operand.vmem [shape: f32[1,128], index: 11, kind: input, shape index: {}]
  %s12 = inlined_call_operand.vmem [shape: f32[1,128], index: 12, kind: input, shape index: {}]
  %s13 = inlined_call_operand.<no memory space> [shape: f32[1,1], index: 13, kind: input, shape index: {}]
  %s14 = inlined_call_operand.hbm [shape: f32[8,384], index: 14, kind: output, shape index: {}]
  %s15 = sld [smem:[#allocation0]]
  $region90: #{tpu_custom_call.1} parent=0
    _
  %s17 = ssub.s32 1, %s15
  %s18 = scalar_select 0, %s17, %s15
  %19 = sst [smem:[#allocation2]] %s13
  $region1: #{tpu_custom_call.1} parent=0
    #allocation3 [shape = 'u8[2048]{0}', space=vmem, size = 0x800, scoped, tag = 'input window, operand 0, single buffered']
    #allocation4 [shape = 's32[1]{0}', space=sflag, size = 0x4, scoped, tag = 'scoped memory for tpu_custom_call.1']
    #allocation5 [shape = 's32[1]{0}', space=sflag, size = 0x4, scoped, tag = 'scoped memory for tpu_custom_call.1']
    #allocation6 [shape = 'u8[2048]{0}', space=vmem, size = 0x800, scoped, tag = 'input window, operand 1, single buffered']
    #allocation7 [shape = 's32[1]{0}', space=sflag, size = 0x4, scoped, tag = 'scoped memory for tpu_custom_call.1']
    #allocation8 [shape = 'u8[8192]{0}', space=vmem, size = 0x2000, scoped, tag = 'input window, operand 2, single buffered']
    #allocation9 [shape = 'u8[32768]{0}', space=vmem, size = 0x8000, scoped, tag = 'input window, operand 6, single buffered']
    #allocation10 [shape = 's32[1]{0}', space=sflag, size = 0x4, scoped, tag = 'scoped memory for tpu_custom_call.1']
    #allocation11 [shape = 'u8[8192]{0}', space=vmem, size = 0x2000, scoped, tag = 'input window, operand 7, single buffered']
    #allocation12 [shape = 'u8[32768]{0}', space=vmem, size = 0x8000, scoped, tag = 'input window, operand 8, single buffered']
    #allocation13 [shape = 's32[1]{0}', space=sflag, size = 0x4, scoped, tag = 'scoped memory for tpu_custom_call.1']
    #allocation14 [shape = 'u8[12288]{0}', space=vmem, size = 0x3000, scoped, tag = 'output window, operand 0, single buffered']
    %20 = vsyncpa [#allocation4], 0
    %21 = vsyncpa [#allocation7], 0
    %22 = vsyncpa [#allocation10], 0
    %23 = vsyncpa [#allocation13], 0
    %24 = vsyncpa [#allocation5], 0
    // Predicated region
    $region2: #{tpu_custom_call.1} parent=1 // pred_check
      _
    $region3: #{tpu_custom_call.1} parent=1 // pred_check_branch
      %26 = sbr.rel (0) target = $region5
    $region4: #{tpu_custom_call.1} parent=1 // pred_region
      %s28 = ssub.s32 64, 64
      %29 = vsyncadd [#allocation4], %s28
      %s31 = sshll.u32 [#allocation3], 4
      %s32 = int_to_ptr.vmem [resolvable:$true] %s31
      %34 = dma.hbm_to_vmem [thread:$0]  %s0, 64, %s32, [#allocation4]
    $region5: #{tpu_custom_call.1} parent=1 // pred_fallthru
      _
    // Predicated region
    $region6: #{tpu_custom_call.1} parent=1 // pred_check
      _
    $region7: #{tpu_custom_call.1} parent=1 // pred_check_branch
      %36 = sbr.rel (0) target = $region9
    $region8: #{tpu_custom_call.1} parent=1 // pred_region
      %s38 = ssub.s32 64, 64
      %39 = vsyncadd [#allocation7], %s38
      %s41 = sshll.u32 [#allocation6], 4
      %s42 = int_to_ptr.vmem [resolvable:$true] %s41
      %44 = dma.hbm_to_vmem [thread:$0]  %s1, 64, %s42, [#allocation7]
    $region9: #{tpu_custom_call.1} parent=1 // pred_fallthru
      _
    // Predicated region
    $region10: #{tpu_custom_call.1} parent=1 // pred_check
      _
    $region11: #{tpu_custom_call.1} parent=1 // pred_check_branch
      %46 = sbr.rel (0) target = $region13
    $region12: #{tpu_custom_call.1} parent=1 // pred_region
      %s48 = ssub.s32 256, 256
      %49 = vsyncadd [#allocation7], %s48
      %s50 = sshll.u32 [#allocation8], 4
      %s51 = int_to_ptr.vmem [resolvable:$true] %s50
      %56 = dma.hbm_to_vmem [thread:$0]  %s2, 256, %s51, [#allocation7], 64, 64, 4
    $region13: #{tpu_custom_call.1} parent=1 // pred_fallthru
      _
    // Predicated region
    $region14: #{tpu_custom_call.1} parent=1 // pred_check
      _
    $region15: #{tpu_custom_call.1} parent=1 // pred_check_branch
      %58 = sbr.rel (0) target = $region17
    $region16: #{tpu_custom_call.1} parent=1 // pred_region
      _
    $region17: #{tpu_custom_call.1} parent=1 // pred_fallthru
      _
    // Predicated region
    $region18: #{tpu_custom_call.1} parent=1 // pred_check
      _
    $region19: #{tpu_custom_call.1} parent=1 // pred_check_branch
      %60 = sbr.rel (0) target = $region21
    $region20: #{tpu_custom_call.1} parent=1 // pred_region
      _
    $region21: #{tpu_custom_call.1} parent=1 // pred_fallthru
      _
    // Predicated region
    $region22: #{tpu_custom_call.1} parent=1 // pred_check
      _
    $region23: #{tpu_custom_call.1} parent=1 // pred_check_branch
      %62 = sbr.rel (0) target = $region25
    $region24: #{tpu_custom_call.1} parent=1 // pred_region
      _
    $region25: #{tpu_custom_call.1} parent=1 // pred_fallthru
      _
    // Predicated region
    $region26: #{tpu_custom_call.1} parent=1 // pred_check
      _
    $region27: #{tpu_custom_call.1} parent=1 // pred_check_branch
      %64 = sbr.rel (0) target = $region29
    $region28: #{tpu_custom_call.1} parent=1 // pred_region
      %s66 = ssub.s32 1024, 1024
      %67 = vsyncadd [#allocation10], %s66
      %s68 = sshll.u32 [#allocation9], 4
      %s69 = int_to_ptr.vmem [resolvable:$true] %s68
      %74 = dma.hbm_to_vmem [thread:$0]  %s6, 1024, %s69, [#allocation10], 64, 64, 4
    $region29: #{tpu_custom_call.1} parent=1 // pred_fallthru
      _
    // Predicated region
    $region30: #{tpu_custom_call.1} parent=1 // pred_check
      _
    $region31: #{tpu_custom_call.1} parent=1 // pred_check_branch
      %76 = sbr.rel (0) target = $region33
    $region32: #{tpu_custom_call.1} parent=1 // pred_region
      %s78 = ssub.s32 256, 256
      %79 = vsyncadd [#allocation10], %s78
      %s80 = sshll.u32 [#allocation11], 4
      %s81 = int_to_ptr.vmem [resolvable:$true] %s80
      %86 = dma.hbm_to_vmem [thread:$0]  %s7, 256, %s81, [#allocation10], 64, 64, 4
    $region33: #{tpu_custom_call.1} parent=1 // pred_fallthru
      _
    // Predicated region
    $region34: #{tpu_custom_call.1} parent=1 // pred_check
      _
    $region35: #{tpu_custom_call.1} parent=1 // pred_check_branch
      %88 = sbr.rel (0) target = $region37
    $region36: #{tpu_custom_call.1} parent=1 // pred_region
      %s90 = ssub.s32 1024, 1024
      %91 = vsyncadd [#allocation13], %s90
      %s92 = sshll.u32 [#allocation12], 4
      %s93 = int_to_ptr.vmem [resolvable:$true] %s92
      %98 = dma.hbm_to_vmem [thread:$0]  %s8, 1024, %s93, [#allocation13], 64, 64, 4
    $region37: #{tpu_custom_call.1} parent=1 // pred_fallthru
      _
    // Predicated region
    $region38: #{tpu_custom_call.1} parent=1 // pred_check
      _
    $region39: #{tpu_custom_call.1} parent=1 // pred_check_branch
      %100 = sbr.rel (0) target = $region41
    $region40: #{tpu_custom_call.1} parent=1 // pred_region
      _
    $region41: #{tpu_custom_call.1} parent=1 // pred_fallthru
      _
    // Predicated region
    $region42: #{tpu_custom_call.1} parent=1 // pred_check
      _
    $region43: #{tpu_custom_call.1} parent=1 // pred_check_branch
      %102 = sbr.rel (0) target = $region45
    $region44: #{tpu_custom_call.1} parent=1 // pred_region
      _
    $region45: #{tpu_custom_call.1} parent=1 // pred_fallthru
      _
    // Predicated region
    $region46: #{tpu_custom_call.1} parent=1 // pred_check
      _
    $region47: #{tpu_custom_call.1} parent=1 // pred_check_branch
      %104 = sbr.rel (0) target = $region49
    $region48: #{tpu_custom_call.1} parent=1 // pred_region
      _
    $region49: #{tpu_custom_call.1} parent=1 // pred_fallthru
      _
    // Predicated region
    $region50: #{tpu_custom_call.1} parent=1 // pred_check
      _
    $region51: #{tpu_custom_call.1} parent=1 // pred_check_branch
      %106 = sbr.rel (0) target = $region53
    $region52: #{tpu_custom_call.1} parent=1 // pred_region
      _
    $region53: #{tpu_custom_call.1} parent=1 // pred_fallthru
      _
    // Predicated region
    $region54: #{tpu_custom_call.1} parent=1 // pred_check
      _
    $region55: #{tpu_custom_call.1} parent=1 // pred_check_branch
      %108 = sbr.rel (0) target = $region57
    $region56: #{tpu_custom_call.1} parent=1 // pred_region
      _
    $region57: #{tpu_custom_call.1} parent=1 // pred_fallthru
      _
    // Predicated region
    $region58: #{tpu_custom_call.1} parent=1 // pred_check
      _
    $region59: #{tpu_custom_call.1} parent=1 // pred_check_branch
      %110 = sbr.rel (0) target = $region61
    $region60: #{tpu_custom_call.1} parent=1 // pred_region
      %111 = dma.done [#allocation4], 64
    $region61: #{tpu_custom_call.1} parent=1 // pred_fallthru
      _
    // Predicated region
    $region62: #{tpu_custom_call.1} parent=1 // pred_check
      _
    $region63: #{tpu_custom_call.1} parent=1 // pred_check_branch
      %113 = sbr.rel (0) target = $region65
    $region64: #{tpu_custom_call.1} parent=1 // pred_region
      %114 = dma.done [#allocation7], 64
    $region65: #{tpu_custom_call.1} parent=1 // pred_fallthru
      _
    // Predicated region
    $region66: #{tpu_custom_call.1} parent=1 // pred_check
      _
    $region67: #{tpu_custom_call.1} parent=1 // pred_check_branch
      %116 = sbr.rel (0) target = $region69
    $region68: #{tpu_custom_call.1} parent=1 // pred_region
      %117 = dma.done [#allocation7], 256
    $region69: #{tpu_custom_call.1} parent=1 // pred_fallthru
      _
    // Predicated region
    $region70: #{tpu_custom_call.1} parent=1 // pred_check
      _
    $region71: #{tpu_custom_call.1} parent=1 // pred_check_branch
      %119 = sbr.rel (0) target = $region73
    $region72: #{tpu_custom_call.1} parent=1 // pred_region
      %120 = dma.done [#allocation10], 1024
    $region73: #{tpu_custom_call.1} parent=1 // pred_fallthru
      _
    // Predicated region
    $region74: #{tpu_custom_call.1} parent=1 // pred_check
      _
    $region75: #{tpu_custom_call.1} parent=1 // pred_check_branch
      %122 = sbr.rel (0) target = $region77
    $region76: #{tpu_custom_call.1} parent=1 // pred_region
      %123 = dma.done [#allocation10], 256
    $region77: #{tpu_custom_call.1} parent=1 // pred_fallthru
      _
    // Predicated region
    $region78: #{tpu_custom_call.1} parent=1 // pred_check
      _
    $region79: #{tpu_custom_call.1} parent=1 // pred_check_branch
      %125 = sbr.rel (0) target = $region81
    $region80: #{tpu_custom_call.1} parent=1 // pred_region
      %126 = dma.done [#allocation13], 1024
    $region81: #{tpu_custom_call.1} parent=1 // pred_fallthru
      _
    %v128 = vld [vmem:[#allocation3] sm:$0xf]
    %v129 = vld [vmem:[#allocation8] sm:$0xf]
    %v130 = vld [vmem:[#allocation8 + $0x4] sm:$0xf]
    %v131 = vld [vmem:[#allocation8 + $0x8] sm:$0xf]
    %v132 = vld [vmem:[#allocation8 + $0xc] sm:$0xf]
    %v133 = vld [vmem:[%s3] sm:$0x1]
    %v135 = vlaneseq
    %v136 = vshrl.u32 %v135, 7
    %v137 = vsub.s32 0, %v136
    %v138 = vrot.slane %v133, %v137
    %v144 = vunpack.c.l.b16 %v129
    %v145 = vunpack.c.l.b16 %v130
    %v146 = vunpack.c.l.b16 %v131
    %v147 = vunpack.c.l.b16 %v132
    %v148 = vpack.c.b16 %v145, %v144
    %v149 = vpack.c.b16 %v147, %v146
    %vm152 = vcmask 261120
    %v154 = vsel %vm152, %v128, 0
    %156 = vmatprep.subr.bf16.mxu0 0
    %157 = vmatpush1.bf16.msra.mxu0 %v148
    %158 = vmatprep.subr.bf16.mxu0 0
    %159 = vmatpush1.bf16.msra.mxu0 %v149
    %160 = vmatprep.subr.bf16.mxu0 0
    %161 = vmatpush1.bf16.msra.mxu0 0
    %162 = vmatprep.subr.bf16.mxu0 0
    %163 = vmatpush1.bf16.msra.mxu0 0
    %164 = vmatprep.subr.bf16.mxu0 0
    %165 = vmatpush1.bf16.msra.mxu0 0
    %166 = vmatprep.subr.bf16.mxu0 0
    %167 = vmatpush1.bf16.msra.mxu0 0
    %168 = vmatprep.subr.bf16.mxu0 0
    %169 = vmatpush1.bf16.msra.mxu0 0
    %170 = vmatprep.subr.bf16.mxu0 0
    %171 = vmatpush1.bf16.msra.mxu0 0
    %172 = vmatprep.subr.bf16.mxu0 0
    %173 = vmatpush1.bf16.msra.mxu0 0
    %174 = vmatprep.subr.bf16.mxu0 0
    %175 = vmatpush1.bf16.msra.mxu0 0
    %176 = vmatprep.subr.bf16.mxu0 0
    %177 = vmatpush1.bf16.msra.mxu0 0
    %178 = vmatprep.subr.bf16.mxu0 0
    %179 = vmatpush1.bf16.msra.mxu0 0
    %180 = vmatprep.subr.bf16.mxu0 0
    %181 = vmatpush1.bf16.msra.mxu0 0
    %182 = vmatprep.subr.bf16.mxu0 0
    %183 = vmatpush1.bf16.msra.mxu0 0
    %184 = vmatprep.subr.bf16.mxu0 0
    %185 = vmatpush1.bf16.msra.mxu0 0
    %186 = vmatprep.subr.bf16.mxu0 0
    %187 = vmatpush1.bf16.msra.mxu0 0
    %188 = vmatprep.mubr.bf16.mxu0 0
    %189 = vmatmul.mubr.bf16.gmra.mrb[0].mxu0 %v154
    %v190 = vpop.f32.mrb[0].mxu0
    %v191 = vadd.f32 %v138, %v190
    %v192 = vpop.f32.mrb[0].mxu0
    %v193 = vpop.f32.mrb[0].mxu0
    %v194 = vpop.f32.mrb[0].mxu0
    %195 = vdwg.mxu0
    %v196 = vmax.f32 %v191, 0.0
    %v197 = vpack.c.bf16 %v196, %v196
    %v198 = vld [vmem:[#allocation9] sm:$0xf]
    %v199 = vld [vmem:[#allocation9 + $0x4] sm:$0xf]
    %v200 = vld [vmem:[#allocation9 + $0x8] sm:$0xf]
    %v201 = vld [vmem:[#allocation9 + $0xc] sm:$0xf]
    %v202 = vld [vmem:[#allocation9 + $0x10] sm:$0xf]
    %v203 = vld [vmem:[#allocation9 + $0x14] sm:$0xf]
    %v204 = vld [vmem:[#allocation9 + $0x18] sm:$0xf]
    %v205 = vld [vmem:[#allocation9 + $0x1c] sm:$0xf]
    %v206 = vld [vmem:[#allocation9 + $0x20] sm:$0xf]
    %v207 = vld [vmem:[#allocation9 + $0x24] sm:$0xf]
    %v208 = vld [vmem:[#allocation9 + $0x28] sm:$0xf]
    %v209 = vld [vmem:[#allocation9 + $0x2c] sm:$0xf]
    %v210 = vld [vmem:[#allocation9 + $0x30] sm:$0xf]
    %v211 = vld [vmem:[#allocation9 + $0x34] sm:$0xf]
    %v212 = vld [vmem:[#allocation9 + $0x38] sm:$0xf]
    %v213 = vld [vmem:[#allocation9 + $0x3c] sm:$0xf]
    %v214 = vld [vmem:[#allocation11] sm:$0xf]
    %v215 = vld [vmem:[#allocation11 + $0x4] sm:$0xf]
    %v216 = vld [vmem:[#allocation11 + $0x8] sm:$0xf]
    %v217 = vld [vmem:[#allocation11 + $0xc] sm:$0xf]
    %v222 = vunpack.c.l.b16 %v214
    %v223 = vunpack.c.l.b16 %v215
    %v224 = vunpack.c.l.b16 %v216
    %v225 = vunpack.c.l.b16 %v217
    %v226 = vpack.c.b16 %v223, %v222
    %v227 = vpack.c.b16 %v225, %v224
    %230 = vmatprep.subr.bf16.mxu0 0
    %231 = vmatpush1.bf16.msra.mxu0 %v226
    %232 = vmatprep.subr.bf16.mxu0 0
    %233 = vmatpush1.bf16.msra.mxu0 %v227
    %234 = vmatprep.subr.bf16.mxu0 0
    %235 = vmatpush1.bf16.msra.mxu0 0
    %236 = vmatprep.subr.bf16.mxu0 0
    %237 = vmatpush1.bf16.msra.mxu0 0
    %238 = vmatprep.subr.bf16.mxu0 0
    %239 = vmatpush1.bf16.msra.mxu0 0
    %240 = vmatprep.subr.bf16.mxu0 0
    %241 = vmatpush1.bf16.msra.mxu0 0
    %242 = vmatprep.subr.bf16.mxu0 0
    %243 = vmatpush1.bf16.msra.mxu0 0
    %244 = vmatprep.subr.bf16.mxu0 0
    %245 = vmatpush1.bf16.msra.mxu0 0
    %246 = vmatprep.subr.bf16.mxu0 0
    %247 = vmatpush1.bf16.msra.mxu0 0
    %248 = vmatprep.subr.bf16.mxu0 0
    %249 = vmatpush1.bf16.msra.mxu0 0
    %250 = vmatprep.subr.bf16.mxu0 0
    %251 = vmatpush1.bf16.msra.mxu0 0
    %252 = vmatprep.subr.bf16.mxu0 0
    %253 = vmatpush1.bf16.msra.mxu0 0
    %254 = vmatprep.subr.bf16.mxu0 0
    %255 = vmatpush1.bf16.msra.mxu0 0
    %256 = vmatprep.subr.bf16.mxu0 0
    %257 = vmatpush1.bf16.msra.mxu0 0
    %258 = vmatprep.subr.bf16.mxu0 0
    %259 = vmatpush1.bf16.msra.mxu0 0
    %260 = vmatprep.subr.bf16.mxu0 0
    %261 = vmatpush1.bf16.msra.mxu0 0
    %262 = vmatprep.mubr.bf16.mxu0 0
    %263 = vmatmul.mubr.bf16.gmra.mrb[0].mxu0 %v154
    %v264 = vpop.f32.mrb[0].mxu0
    %v265 = vadd.f32 0.0, %v264
    %v266 = vpop.f32.mrb[0].mxu0
    %v267 = vpop.f32.mrb[0].mxu0
    %v268 = vpop.f32.mrb[0].mxu0
    %269 = vdwg.mxu0
    %v286 = vunpack.c.l.b16 %v198
    %v287 = vunpack.c.l.b16 %v199
    %v288 = vunpack.c.l.b16 %v200
    %v289 = vunpack.c.l.b16 %v201
    %v290 = vunpack.c.l.b16 %v202
    %v291 = vunpack.c.l.b16 %v203
    %v292 = vunpack.c.l.b16 %v204
    %v293 = vunpack.c.l.b16 %v205
    %v294 = vunpack.c.l.b16 %v206
    %v295 = vunpack.c.l.b16 %v207
    %v296 = vunpack.c.l.b16 %v208
    %v297 = vunpack.c.l.b16 %v209
    %v298 = vunpack.c.l.b16 %v210
    %v299 = vunpack.c.l.b16 %v211
    %v300 = vunpack.c.l.b16 %v212
    %v301 = vunpack.c.l.b16 %v213
    %v302 = vpack.c.b16 %v287, %v286
    %v303 = vpack.c.b16 %v289, %v288
    %v304 = vpack.c.b16 %v291, %v290
    %v305 = vpack.c.b16 %v293, %v292
    %v306 = vpack.c.b16 %v295, %v294
    %v307 = vpack.c.b16 %v297, %v296
    %v308 = vpack.c.b16 %v299, %v298
    %v309 = vpack.c.b16 %v301, %v300
    %318 = vmatprep.subr.bf16.mxu0 0
    %319 = vmatpush1.bf16.msra.mxu0 %v302
    %320 = vmatprep.subr.bf16.mxu0 0
    %321 = vmatpush1.bf16.msra.mxu0 %v303
    %322 = vmatprep.subr.bf16.mxu0 0
    %323 = vmatpush1.bf16.msra.mxu0 %v304
    %324 = vmatprep.subr.bf16.mxu0 0
    %325 = vmatpush1.bf16.msra.mxu0 %v305
    %326 = vmatprep.subr.bf16.mxu0 0
    %327 = vmatpush1.bf16.msra.mxu0 %v306
    %328 = vmatprep.subr.bf16.mxu0 0
    %329 = vmatpush1.bf16.msra.mxu0 %v307
    %330 = vmatprep.subr.bf16.mxu0 0
    %331 = vmatpush1.bf16.msra.mxu0 %v308
    %332 = vmatprep.subr.bf16.mxu0 0
    %333 = vmatpush1.bf16.msra.mxu0 %v309
    %334 = vmatprep.subr.bf16.mxu0 0
    %335 = vmatpush1.bf16.msra.mxu0 0
    %336 = vmatprep.subr.bf16.mxu0 0
    %337 = vmatpush1.bf16.msra.mxu0 0
    %338 = vmatprep.subr.bf16.mxu0 0
    %339 = vmatpush1.bf16.msra.mxu0 0
    %340 = vmatprep.subr.bf16.mxu0 0
    %341 = vmatpush1.bf16.msra.mxu0 0
    %342 = vmatprep.subr.bf16.mxu0 0
    %343 = vmatpush1.bf16.msra.mxu0 0
    %344 = vmatprep.subr.bf16.mxu0 0
    %345 = vmatpush1.bf16.msra.mxu0 0
    %346 = vmatprep.subr.bf16.mxu0 0
    %347 = vmatpush1.bf16.msra.mxu0 0
    %348 = vmatprep.subr.bf16.mxu0 0
    %349 = vmatpush1.bf16.msra.mxu0 0
    %350 = vmatprep.mubr.bf16.mxu0 0
    %351 = vmatmul.mubr.bf16.gmra.mrb[0].mxu0 %v197
    %v352 = vpop.f32.mrb[0].mxu0
    %v353 = vadd.f32 %v265, %v352
    %v354 = vpop.f32.mrb[0].mxu0
    %v355 = vpop.f32.mrb[0].mxu0
    %v356 = vpop.f32.mrb[0].mxu0
    %357 = vdwg.mxu0
    %v358 = vld [vmem:[%s10] sm:$0x1]
    %v360 = vlaneseq
    %v361 = vshrl.u32 %v360, 7
    %v362 = vsub.s32 0, %v361
    %v363 = vrot.slane %v358, %v362
    %v365 = vadd.f32 %v353, %v363
    %v366 = vmax.f32 %v365, 0.0
    %367 = vst [vmem:[#allocation14] sm:$0xff] %v366
    %v368 = vld [vmem:[%s11] sm:$0x1]
    %v370 = vlaneseq
    %v371 = vshrl.u32 %v370, 7
    %v372 = vsub.s32 0, %v371
    %v373 = vrot.slane %v368, %v372
    %v375 = vmul.f32 %v366, %v373
    %376 = vadd.xlane.f32.xlu0 %v375
    %v377 = vpop.xlane.xlu0 %376
    %v378 = vld [vmem:[#allocation6] sm:$0xf]
    %v379 = vld [vmem:[%s4] sm:$0xf]
    %v380 = vld [vmem:[%s4 + $0x4] sm:$0xf]
    %v381 = vld [vmem:[%s4 + $0x8] sm:$0xf]
    %v382 = vld [vmem:[%s4 + $0xc] sm:$0xf]
    %v383 = vld [vmem:[%s5] sm:$0x1]
    %v385 = vlaneseq
    %v386 = vshrl.u32 %v385, 7
    %v387 = vsub.s32 0, %v386
    %v388 = vrot.slane %v383, %v387
    %v394 = vunpack.c.l.b16 %v379
    %v395 = vunpack.c.l.b16 %v380
    %v396 = vunpack.c.l.b16 %v381
    %v397 = vunpack.c.l.b16 %v382
    %v398 = vpack.c.b16 %v395, %v394
    %v399 = vpack.c.b16 %v397, %v396
    %v403 = vsel %vm152, %v378, 0
    %405 = vmatprep.subr.bf16.mxu0 0
    %406 = vmatpush1.bf16.msra.mxu0 %v398
    %407 = vmatprep.subr.bf16.mxu0 0
    %408 = vmatpush1.bf16.msra.mxu0 %v399
    %409 = vmatprep.subr.bf16.mxu0 0
    %410 = vmatpush1.bf16.msra.mxu0 0
    %411 = vmatprep.subr.bf16.mxu0 0
    %412 = vmatpush1.bf16.msra.mxu0 0
    %413 = vmatprep.subr.bf16.mxu0 0
    %414 = vmatpush1.bf16.msra.mxu0 0
    %415 = vmatprep.subr.bf16.mxu0 0
    %416 = vmatpush1.bf16.msra.mxu0 0
    %417 = vmatprep.subr.bf16.mxu0 0
    %418 = vmatpush1.bf16.msra.mxu0 0
    %419 = vmatprep.subr.bf16.mxu0 0
    %420 = vmatpush1.bf16.msra.mxu0 0
    %421 = vmatprep.subr.bf16.mxu0 0
    %422 = vmatpush1.bf16.msra.mxu0 0
    %423 = vmatprep.subr.bf16.mxu0 0
    %424 = vmatpush1.bf16.msra.mxu0 0
    %425 = vmatprep.subr.bf16.mxu0 0
    %426 = vmatpush1.bf16.msra.mxu0 0
    %427 = vmatprep.subr.bf16.mxu0 0
    %428 = vmatpush1.bf16.msra.mxu0 0
    %429 = vmatprep.subr.bf16.mxu0 0
    %430 = vmatpush1.bf16.msra.mxu0 0
    %431 = vmatprep.subr.bf16.mxu0 0
    %432 = vmatpush1.bf16.msra.mxu0 0
    %433 = vmatprep.subr.bf16.mxu0 0
    %434 = vmatpush1.bf16.msra.mxu0 0
    %435 = vmatprep.subr.bf16.mxu0 0
    %436 = vmatpush1.bf16.msra.mxu0 0
    %437 = vmatprep.mubr.bf16.mxu0 0
    %438 = vmatmul.mubr.bf16.gmra.mrb[0].mxu0 %v403
    %v439 = vpop.f32.mrb[0].mxu0
    %v440 = vadd.f32 %v388, %v439
    %v441 = vpop.f32.mrb[0].mxu0
    %v442 = vpop.f32.mrb[0].mxu0
    %v443 = vpop.f32.mrb[0].mxu0
    %444 = vdwg.mxu0
    %v445 = vmax.f32 %v440, 0.0
    %v446 = vpack.c.bf16 %v445, %v445
    %v447 = vld [vmem:[#allocation12] sm:$0xf]
    %v448 = vld [vmem:[#allocation12 + $0x4] sm:$0xf]
    %v449 = vld [vmem:[#allocation12 + $0x8] sm:$0xf]
    %v450 = vld [vmem:[#allocation12 + $0xc] sm:$0xf]
    %v451 = vld [vmem:[#allocation12 + $0x10] sm:$0xf]
    %v452 = vld [vmem:[#allocation12 + $0x14] sm:$0xf]
    %v453 = vld [vmem:[#allocation12 + $0x18] sm:$0xf]
    %v454 = vld [vmem:[#allocation12 + $0x1c] sm:$0xf]
    %v455 = vld [vmem:[#allocation12 + $0x20] sm:$0xf]
    %v456 = vld [vmem:[#allocation12 + $0x24] sm:$0xf]
    %v457 = vld [vmem:[#allocation12 + $0x28] sm:$0xf]
    %v458 = vld [vmem:[#allocation12 + $0x2c] sm:$0xf]
    %v459 = vld [vmem:[#allocation12 + $0x30] sm:$0xf]
    %v460 = vld [vmem:[#allocation12 + $0x34] sm:$0xf]
    %v461 = vld [vmem:[#allocation12 + $0x38] sm:$0xf]
    %v462 = vld [vmem:[#allocation12 + $0x3c] sm:$0xf]
    %v463 = vld [vmem:[%s9] sm:$0xf]
    %v464 = vld [vmem:[%s9 + $0x4] sm:$0xf]
    %v465 = vld [vmem:[%s9 + $0x8] sm:$0xf]
    %v466 = vld [vmem:[%s9 + $0xc] sm:$0xf]
    %v471 = vunpack.c.l.b16 %v463
    %v472 = vunpack.c.l.b16 %v464
    %v473 = vunpack.c.l.b16 %v465
    %v474 = vunpack.c.l.b16 %v466
    %v475 = vpack.c.b16 %v472, %v471
    %v476 = vpack.c.b16 %v474, %v473
    %479 = vmatprep.subr.bf16.mxu0 0
    %480 = vmatpush1.bf16.msra.mxu0 %v475
    %481 = vmatprep.subr.bf16.mxu0 0
    %482 = vmatpush1.bf16.msra.mxu0 %v476
    %483 = vmatprep.subr.bf16.mxu0 0
    %484 = vmatpush1.bf16.msra.mxu0 0
    %485 = vmatprep.subr.bf16.mxu0 0
    %486 = vmatpush1.bf16.msra.mxu0 0
    %487 = vmatprep.subr.bf16.mxu0 0
    %488 = vmatpush1.bf16.msra.mxu0 0
    %489 = vmatprep.subr.bf16.mxu0 0
    %490 = vmatpush1.bf16.msra.mxu0 0
    %491 = vmatprep.subr.bf16.mxu0 0
    %492 = vmatpush1.bf16.msra.mxu0 0
    %493 = vmatprep.subr.bf16.mxu0 0
    %494 = vmatpush1.bf16.msra.mxu0 0
    %495 = vmatprep.subr.bf16.mxu0 0
    %496 = vmatpush1.bf16.msra.mxu0 0
    %497 = vmatprep.subr.bf16.mxu0 0
    %498 = vmatpush1.bf16.msra.mxu0 0
    %499 = vmatprep.subr.bf16.mxu0 0
    %500 = vmatpush1.bf16.msra.mxu0 0
    %501 = vmatprep.subr.bf16.mxu0 0
    %502 = vmatpush1.bf16.msra.mxu0 0
    %503 = vmatprep.subr.bf16.mxu0 0
    %504 = vmatpush1.bf16.msra.mxu0 0
    %505 = vmatprep.subr.bf16.mxu0 0
    %506 = vmatpush1.bf16.msra.mxu0 0
    %507 = vmatprep.subr.bf16.mxu0 0
    %508 = vmatpush1.bf16.msra.mxu0 0
    %509 = vmatprep.subr.bf16.mxu0 0
    %510 = vmatpush1.bf16.msra.mxu0 0
    %511 = vmatprep.mubr.bf16.mxu0 0
    %512 = vmatmul.mubr.bf16.gmra.mrb[0].mxu0 %v403
    %v513 = vpop.f32.mrb[0].mxu0
    %v514 = vadd.f32 0.0, %v513
    %v515 = vpop.f32.mrb[0].mxu0
    %v516 = vpop.f32.mrb[0].mxu0
    %v517 = vpop.f32.mrb[0].mxu0
    %518 = vdwg.mxu0
    %v535 = vunpack.c.l.b16 %v447
    %v536 = vunpack.c.l.b16 %v448
    %v537 = vunpack.c.l.b16 %v449
    %v538 = vunpack.c.l.b16 %v450
    %v539 = vunpack.c.l.b16 %v451
    %v540 = vunpack.c.l.b16 %v452
    %v541 = vunpack.c.l.b16 %v453
    %v542 = vunpack.c.l.b16 %v454
    %v543 = vunpack.c.l.b16 %v455
    %v544 = vunpack.c.l.b16 %v456
    %v545 = vunpack.c.l.b16 %v457
    %v546 = vunpack.c.l.b16 %v458
    %v547 = vunpack.c.l.b16 %v459
    %v548 = vunpack.c.l.b16 %v460
    %v549 = vunpack.c.l.b16 %v461
    %v550 = vunpack.c.l.b16 %v462
    %v551 = vpack.c.b16 %v536, %v535
    %v552 = vpack.c.b16 %v538, %v537
    %v553 = vpack.c.b16 %v540, %v539
    %v554 = vpack.c.b16 %v542, %v541
    %v555 = vpack.c.b16 %v544, %v543
    %v556 = vpack.c.b16 %v546, %v545
    %v557 = vpack.c.b16 %v548, %v547
    %v558 = vpack.c.b16 %v550, %v549
    %567 = vmatprep.subr.bf16.mxu0 0
    %568 = vmatpush1.bf16.msra.mxu0 %v551
    %569 = vmatprep.subr.bf16.mxu0 0
    %570 = vmatpush1.bf16.msra.mxu0 %v552
    %571 = vmatprep.subr.bf16.mxu0 0
    %572 = vmatpush1.bf16.msra.mxu0 %v553
    %573 = vmatprep.subr.bf16.mxu0 0
    %574 = vmatpush1.bf16.msra.mxu0 %v554
    %575 = vmatprep.subr.bf16.mxu0 0
    %576 = vmatpush1.bf16.msra.mxu0 %v555
    %577 = vmatprep.subr.bf16.mxu0 0
    %578 = vmatpush1.bf16.msra.mxu0 %v556
    %579 = vmatprep.subr.bf16.mxu0 0
    %580 = vmatpush1.bf16.msra.mxu0 %v557
    %581 = vmatprep.subr.bf16.mxu0 0
    %582 = vmatpush1.bf16.msra.mxu0 %v558
    %583 = vmatprep.subr.bf16.mxu0 0
    %584 = vmatpush1.bf16.msra.mxu0 0
    %585 = vmatprep.subr.bf16.mxu0 0
    %586 = vmatpush1.bf16.msra.mxu0 0
    %587 = vmatprep.subr.bf16.mxu0 0
    %588 = vmatpush1.bf16.msra.mxu0 0
    %589 = vmatprep.subr.bf16.mxu0 0
    %590 = vmatpush1.bf16.msra.mxu0 0
    %591 = vmatprep.subr.bf16.mxu0 0
    %592 = vmatpush1.bf16.msra.mxu0 0
    %593 = vmatprep.subr.bf16.mxu0 0
    %594 = vmatpush1.bf16.msra.mxu0 0
    %595 = vmatprep.subr.bf16.mxu0 0
    %596 = vmatpush1.bf16.msra.mxu0 0
    %597 = vmatprep.subr.bf16.mxu0 0
    %598 = vmatpush1.bf16.msra.mxu0 0
    %599 = vmatprep.mubr.bf16.mxu0 0
    %600 = vmatmul.mubr.bf16.gmra.mrb[0].mxu0 %v446
    %v601 = vpop.f32.mrb[0].mxu0
    %v602 = vadd.f32 %v514, %v601
    %v603 = vpop.f32.mrb[0].mxu0
    %v604 = vpop.f32.mrb[0].mxu0
    %v605 = vpop.f32.mrb[0].mxu0
    %606 = vdwg.mxu0
    %v607 = vld [vmem:[%s10] sm:$0x1]
    %v609 = vlaneseq
    %v610 = vshrl.u32 %v609, 7
    %v611 = vsub.s32 0, %v610
    %v612 = vrot.slane %v607, %v611
    %v614 = vadd.f32 %v602, %v612
    %v615 = vmax.f32 %v614, 0.0
    %616 = vst [vmem:[#allocation14 + $0x8] sm:$0xff] %v615
    %v617 = vld [vmem:[%s12] sm:$0x1]
    %v619 = vlaneseq
    %v620 = vshrl.u32 %v619, 7
    %v621 = vsub.s32 0, %v620
    %v622 = vrot.slane %v617, %v621
    %v624 = vmul.f32 %v615, %v622
    %625 = vadd.xlane.f32.xlu0 %v624
    %v626 = vpop.xlane.xlu0 %625
    %v627 = vadd.f32 %v377, %v626
    %s628 = sld [smem:[#allocation2]]
    %v629 = vstv %s628
    %v630 = vadd.f32 %v627, %v629
    %v631 = vlaneseq
    %v632 = vand.u32 %v631, 127
    %vm633 = vcmp.eq.s32.totalorder %v632, 0
    %v634 = vsel %vm633, %v630, 0.0
    %635 = vst [vmem:[#allocation14 + $0x10] sm:$0xff] %v634
    // Predicated region
    $region82: #{tpu_custom_call.1} parent=1 // pred_check
      _
    $region83: #{tpu_custom_call.1} parent=1 // pred_check_branch
      %637 = sbr.rel (0) target = $region85
    $region84: #{tpu_custom_call.1} parent=1 // pred_region
      %s639 = ssub.s32 384, 384
      %640 = vsyncadd [#allocation5], %s639
      %s642 = sshll.u32 [#allocation14], 4
      %s643 = int_to_ptr.vmem [resolvable:$true] %s642
      %645 = dma.vmem_to_hbm [thread:$0]  %s643, 384, %s14, [#allocation5]
    $region85: #{tpu_custom_call.1} parent=1 // pred_fallthru
      _
    // Predicated region
    $region86: #{tpu_custom_call.1} parent=1 // pred_check
      _
    $region87: #{tpu_custom_call.1} parent=1 // pred_check_branch
      %647 = sbr.rel (0) target = $region89
    $region88: #{tpu_custom_call.1} parent=1 // pred_region
      %648 = dma.done [#allocation5], 384
    $region89: #{tpu_custom_call.1} parent=1 // pred_fallthru
      _
    %649 = vsyncpa [#allocation4], 1
    %650 = vsyncpa [#allocation7], 1
    %651 = vsyncpa [#allocation10], 1
    %652 = vsyncpa [#allocation13], 1
    %653 = vsyncpa [#allocation5], 1

// kernel: tpu_custom_call.1
$region0: #{tpu_custom_call.1}
  #allocation0 [shape = 'u32[]', space=smem, size = 0x4, offset = 0x4, fixed_abs, tag = 'smem constant byte address 0x4 - core index']
  #allocation1 [shape = 'u32[144,128]{1,0:T(1,128)}', space=vmem, size = 0x12000, scoped, tag = 'internal scratch']
  #allocation2 [shape = 'f32[1,1]{1,0:T(1,128)S(6)}', space=smem, size = 0x200, scoped, tag = 'scoped memory for tpu_custom_call.1']
  %s0 = inlined_call_operand.hbm [shape: bf16[8,32], index: 0, kind: input, shape index: {}]
  %s1 = inlined_call_operand.hbm [shape: bf16[8,32], index: 1, kind: input, shape index: {}]
  %s2 = inlined_call_operand.hbm [shape: bf16[32,128], index: 2, kind: input, shape index: {}]
  %s3 = inlined_call_operand.vmem [shape: f32[1,128], index: 3, kind: input, shape index: {}]
  %s4 = inlined_call_operand.vmem [shape: bf16[32,128], index: 4, kind: input, shape index: {}]
  %s5 = inlined_call_operand.vmem [shape: f32[1,128], index: 5, kind: input, shape index: {}]
  %s6 = inlined_call_operand.hbm [shape: bf16[128,128], index: 6, kind: input, shape index: {}]
  %s7 = inlined_call_operand.hbm [shape: bf16[32,128], index: 7, kind: input, shape index: {}]
  %s8 = inlined_call_operand.hbm [shape: bf16[128,128], index: 8, kind: input, shape index: {}]
  %s9 = inlined_call_operand.vmem [shape: bf16[32,128], index: 9, kind: input, shape index: {}]
  %s10 = inlined_call_operand.vmem [shape: f32[1,128], index: 10, kind: input, shape index: {}]
  %s11 = inlined_call_operand.vmem [shape: f32[1,128], index: 11, kind: input, shape index: {}]
  %s12 = inlined_call_operand.vmem [shape: f32[1,128], index: 12, kind: input, shape index: {}]
  %s13 = inlined_call_operand.<no memory space> [shape: f32[1,1], index: 13, kind: input, shape index: {}]
  %s14 = inlined_call_operand.hbm [shape: f32[8,384], index: 14, kind: output, shape index: {}]
  %s15 = sld [smem:[#allocation0]]
  $region90: #{tpu_custom_call.1} parent=0
    _
  %s17 = ssub.s32 1, %s15
  %s18 = scalar_select 0, %s17, %s15
  %19 = sst [smem:[#allocation2]] %s13
  $region1: #{tpu_custom_call.1} parent=0
    #allocation3 [shape = 'u8[2048]{0}', space=vmem, size = 0x800, scoped, tag = 'input window, operand 0, single buffered']
    #allocation4 [shape = 's32[1]{0}', space=sflag, size = 0x4, scoped, tag = 'scoped memory for tpu_custom_call.1']
    #allocation5 [shape = 's32[1]{0}', space=sflag, size = 0x4, scoped, tag = 'scoped memory for tpu_custom_call.1']
    #allocation6 [shape = 'u8[2048]{0}', space=vmem, size = 0x800, scoped, tag = 'input window, operand 1, single buffered']
    #allocation7 [shape = 's32[1]{0}', space=sflag, size = 0x4, scoped, tag = 'scoped memory for tpu_custom_call.1']
    #allocation8 [shape = 'u8[8192]{0}', space=vmem, size = 0x2000, scoped, tag = 'input window, operand 2, single buffered']
    #allocation9 [shape = 'u8[32768]{0}', space=vmem, size = 0x8000, scoped, tag = 'input window, operand 6, single buffered']
    #allocation10 [shape = 's32[1]{0}', space=sflag, size = 0x4, scoped, tag = 'scoped memory for tpu_custom_call.1']
    #allocation11 [shape = 'u8[8192]{0}', space=vmem, size = 0x2000, scoped, tag = 'input window, operand 7, single buffered']
    #allocation12 [shape = 'u8[32768]{0}', space=vmem, size = 0x8000, scoped, tag = 'input window, operand 8, single buffered']
    #allocation13 [shape = 's32[1]{0}', space=sflag, size = 0x4, scoped, tag = 'scoped memory for tpu_custom_call.1']
    #allocation14 [shape = 'u8[12288]{0}', space=vmem, size = 0x3000, scoped, tag = 'output window, operand 0, single buffered']
    %20 = vsyncpa [#allocation4], 0
    %21 = vsyncpa [#allocation7], 0
    %22 = vsyncpa [#allocation10], 0
    %23 = vsyncpa [#allocation13], 0
    %24 = vsyncpa [#allocation5], 0
    // Predicated region
    $region2: #{tpu_custom_call.1} parent=1 // pred_check
      _
    $region3: #{tpu_custom_call.1} parent=1 // pred_check_branch
      %26 = sbr.rel (0) target = $region5
    $region4: #{tpu_custom_call.1} parent=1 // pred_region
      %s28 = ssub.s32 64, 64
      %29 = vsyncadd [#allocation4], %s28
      %s31 = sshll.u32 [#allocation3], 4
      %s32 = int_to_ptr.vmem [resolvable:$true] %s31
      %34 = dma.hbm_to_vmem [thread:$0]  %s0, 64, %s32, [#allocation4]
    $region5: #{tpu_custom_call.1} parent=1 // pred_fallthru
      _
    // Predicated region
    $region6: #{tpu_custom_call.1} parent=1 // pred_check
      _
    $region7: #{tpu_custom_call.1} parent=1 // pred_check_branch
      %36 = sbr.rel (0) target = $region9
    $region8: #{tpu_custom_call.1} parent=1 // pred_region
      %s38 = ssub.s32 64, 64
      %39 = vsyncadd [#allocation7], %s38
      %s41 = sshll.u32 [#allocation6], 4
      %s42 = int_to_ptr.vmem [resolvable:$true] %s41
      %44 = dma.hbm_to_vmem [thread:$0]  %s1, 64, %s42, [#allocation7]
    $region9: #{tpu_custom_call.1} parent=1 // pred_fallthru
      _
    // Predicated region
    $region10: #{tpu_custom_call.1} parent=1 // pred_check
      _
    $region11: #{tpu_custom_call.1} parent=1 // pred_check_branch
      %46 = sbr.rel (0) target = $region13
    $region12: #{tpu_custom_call.1} parent=1 // pred_region
      %s48 = ssub.s32 256, 256
      %49 = vsyncadd [#allocation7], %s48
      %s50 = sshll.u32 [#allocation8], 4
      %s51 = int_to_ptr.vmem [resolvable:$true] %s50
      %56 = dma.hbm_to_vmem [thread:$0]  %s2, 256, %s51, [#allocation7], 64, 64, 4
    $region13: #{tpu_custom_call.1} parent=1 // pred_fallthru
      _
    // Predicated region
    $region14: #{tpu_custom_call.1} parent=1 // pred_check
      _
    $region15: #{tpu_custom_call.1} parent=1 // pred_check_branch
      %58 = sbr.rel (0) target = $region17
    $region16: #{tpu_custom_call.1} parent=1 // pred_region
      _
    $region17: #{tpu_custom_call.1} parent=1 // pred_fallthru
      _
    // Predicated region
    $region18: #{tpu_custom_call.1} parent=1 // pred_check
      _
    $region19: #{tpu_custom_call.1} parent=1 // pred_check_branch
      %60 = sbr.rel (0) target = $region21
    $region20: #{tpu_custom_call.1} parent=1 // pred_region
      _
    $region21: #{tpu_custom_call.1} parent=1 // pred_fallthru
      _
    // Predicated region
    $region22: #{tpu_custom_call.1} parent=1 // pred_check
      _
    $region23: #{tpu_custom_call.1} parent=1 // pred_check_branch
      %62 = sbr.rel (0) target = $region25
    $region24: #{tpu_custom_call.1} parent=1 // pred_region
      _
    $region25: #{tpu_custom_call.1} parent=1 // pred_fallthru
      _
    // Predicated region
    $region26: #{tpu_custom_call.1} parent=1 // pred_check
      _
    $region27: #{tpu_custom_call.1} parent=1 // pred_check_branch
      %64 = sbr.rel (0) target = $region29
    $region28: #{tpu_custom_call.1} parent=1 // pred_region
      %s66 = ssub.s32 1024, 1024
      %67 = vsyncadd [#allocation10], %s66
      %s68 = sshll.u32 [#allocation9], 4
      %s69 = int_to_ptr.vmem [resolvable:$true] %s68
      %74 = dma.hbm_to_vmem [thread:$0]  %s6, 1024, %s69, [#allocation10], 64, 64, 4
    $region29: #{tpu_custom_call.1} parent=1 // pred_fallthru
      _
    // Predicated region
    $region30: #{tpu_custom_call.1} parent=1 // pred_check
      _
    $region31: #{tpu_custom_call.1} parent=1 // pred_check_branch
      %76 = sbr.rel (0) target = $region33
    $region32: #{tpu_custom_call.1} parent=1 // pred_region
      %s78 = ssub.s32 256, 256
      %79 = vsyncadd [#allocation10], %s78
      %s80 = sshll.u32 [#allocation11], 4
      %s81 = int_to_ptr.vmem [resolvable:$true] %s80
      %86 = dma.hbm_to_vmem [thread:$0]  %s7, 256, %s81, [#allocation10], 64, 64, 4
    $region33: #{tpu_custom_call.1} parent=1 // pred_fallthru
      _
    // Predicated region
    $region34: #{tpu_custom_call.1} parent=1 // pred_check
      _
    $region35: #{tpu_custom_call.1} parent=1 // pred_check_branch
      %88 = sbr.rel (0) target = $region37
    $region36: #{tpu_custom_call.1} parent=1 // pred_region
      %s90 = ssub.s32 1024, 1024
      %91 = vsyncadd [#allocation13], %s90
      %s92 = sshll.u32 [#allocation12], 4
      %s93 = int_to_ptr.vmem [resolvable:$true] %s92
      %98 = dma.hbm_to_vmem [thread:$0]  %s8, 1024, %s93, [#allocation13], 64, 64, 4
    $region37: #{tpu_custom_call.1} parent=1 // pred_fallthru
      _
    // Predicated region
    $region38: #{tpu_custom_call.1} parent=1 // pred_check
      _
    $region39: #{tpu_custom_call.1} parent=1 // pred_check_branch
      %100 = sbr.rel (0) target = $region41
    $region40: #{tpu_custom_call.1} parent=1 // pred_region
      _
    $region41: #{tpu_custom_call.1} parent=1 // pred_fallthru
      _
    // Predicated region
    $region42: #{tpu_custom_call.1} parent=1 // pred_check
      _
    $region43: #{tpu_custom_call.1} parent=1 // pred_check_branch
      %102 = sbr.rel (0) target = $region45
    $region44: #{tpu_custom_call.1} parent=1 // pred_region
      _
    $region45: #{tpu_custom_call.1} parent=1 // pred_fallthru
      _
    // Predicated region
    $region46: #{tpu_custom_call.1} parent=1 // pred_check
      _
    $region47: #{tpu_custom_call.1} parent=1 // pred_check_branch
      %104 = sbr.rel (0) target = $region49
    $region48: #{tpu_custom_call.1} parent=1 // pred_region
      _
    $region49: #{tpu_custom_call.1} parent=1 // pred_fallthru
      _
    // Predicated region
    $region50: #{tpu_custom_call.1} parent=1 // pred_check
      _
    $region51: #{tpu_custom_call.1} parent=1 // pred_check_branch
      %106 = sbr.rel (0) target = $region53
    $region52: #{tpu_custom_call.1} parent=1 // pred_region
      _
    $region53: #{tpu_custom_call.1} parent=1 // pred_fallthru
      _
    // Predicated region
    $region54: #{tpu_custom_call.1} parent=1 // pred_check
      _
    $region55: #{tpu_custom_call.1} parent=1 // pred_check_branch
      %108 = sbr.rel (0) target = $region57
    $region56: #{tpu_custom_call.1} parent=1 // pred_region
      _
    $region57: #{tpu_custom_call.1} parent=1 // pred_fallthru
      _
    // Predicated region
    $region58: #{tpu_custom_call.1} parent=1 // pred_check
      _
    $region59: #{tpu_custom_call.1} parent=1 // pred_check_branch
      %110 = sbr.rel (0) target = $region61
    $region60: #{tpu_custom_call.1} parent=1 // pred_region
      %111 = dma.done [#allocation4], 64
    $region61: #{tpu_custom_call.1} parent=1 // pred_fallthru
      _
    // Predicated region
    $region62: #{tpu_custom_call.1} parent=1 // pred_check
      _
    $region63: #{tpu_custom_call.1} parent=1 // pred_check_branch
      %113 = sbr.rel (0) target = $region65
    $region64: #{tpu_custom_call.1} parent=1 // pred_region
      %114 = dma.done [#allocation7], 64
    $region65: #{tpu_custom_call.1} parent=1 // pred_fallthru
      _
    // Predicated region
    $region66: #{tpu_custom_call.1} parent=1 // pred_check
      _
    $region67: #{tpu_custom_call.1} parent=1 // pred_check_branch
      %116 = sbr.rel (0) target = $region69
    $region68: #{tpu_custom_call.1} parent=1 // pred_region
      %117 = dma.done [#allocation7], 256
    $region69: #{tpu_custom_call.1} parent=1 // pred_fallthru
      _
    // Predicated region
    $region70: #{tpu_custom_call.1} parent=1 // pred_check
      _
    $region71: #{tpu_custom_call.1} parent=1 // pred_check_branch
      %119 = sbr.rel (0) target = $region73
    $region72: #{tpu_custom_call.1} parent=1 // pred_region
      %120 = dma.done [#allocation10], 1024
    $region73: #{tpu_custom_call.1} parent=1 // pred_fallthru
      _
    // Predicated region
    $region74: #{tpu_custom_call.1} parent=1 // pred_check
      _
    $region75: #{tpu_custom_call.1} parent=1 // pred_check_branch
      %122 = sbr.rel (0) target = $region77
    $region76: #{tpu_custom_call.1} parent=1 // pred_region
      %123 = dma.done [#allocation10], 256
    $region77: #{tpu_custom_call.1} parent=1 // pred_fallthru
      _
    // Predicated region
    $region78: #{tpu_custom_call.1} parent=1 // pred_check
      _
    $region79: #{tpu_custom_call.1} parent=1 // pred_check_branch
      %125 = sbr.rel (0) target = $region81
    $region80: #{tpu_custom_call.1} parent=1 // pred_region
      %126 = dma.done [#allocation13], 1024
    $region81: #{tpu_custom_call.1} parent=1 // pred_fallthru
      _
    %v128 = vld [vmem:[#allocation3] sm:$0xf]
    %v129 = vld [vmem:[#allocation8] sm:$0xf]
    %v130 = vld [vmem:[#allocation8 + $0x4] sm:$0xf]
    %v131 = vld [vmem:[#allocation8 + $0x8] sm:$0xf]
    %v132 = vld [vmem:[#allocation8 + $0xc] sm:$0xf]
    %v133 = vld [vmem:[%s3] sm:$0x1]
    %v135 = vlaneseq
    %v136 = vshrl.u32 %v135, 7
    %v137 = vsub.s32 0, %v136
    %v138 = vrot.slane %v133, %v137
    %v144 = vunpack.c.l.b16 %v129
    %v145 = vunpack.c.l.b16 %v130
    %v146 = vunpack.c.l.b16 %v131
    %v147 = vunpack.c.l.b16 %v132
    %v148 = vpack.c.b16 %v145, %v144
    %v149 = vpack.c.b16 %v147, %v146
    %vm152 = vcmask 261120
    %v154 = vsel %vm152, %v128, 0
    %156 = vmatprep.subr.bf16.mxu0 0
    %157 = vmatpush1.bf16.msra.mxu0 %v148
    %158 = vmatprep.subr.bf16.mxu0 0
    %159 = vmatpush1.bf16.msra.mxu0 %v149
    %160 = vmatprep.subr.bf16.mxu0 0
    %161 = vmatpush1.bf16.msra.mxu0 0
    %162 = vmatprep.subr.bf16.mxu0 0
    %163 = vmatpush1.bf16.msra.mxu0 0
    %164 = vmatprep.subr.bf16.mxu0 0
    %165 = vmatpush1.bf16.msra.mxu0 0
    %166 = vmatprep.subr.bf16.mxu0 0
    %167 = vmatpush1.bf16.msra.mxu0 0
    %168 = vmatprep.subr.bf16.mxu0 0
    %169 = vmatpush1.bf16.msra.mxu0 0
    %170 = vmatprep.subr.bf16.mxu0 0
    %171 = vmatpush1.bf16.msra.mxu0 0
    %172 = vmatprep.subr.bf16.mxu0 0
    %173 = vmatpush1.bf16.msra.mxu0 0
    %174 = vmatprep.subr.bf16.mxu0 0
    %175 = vmatpush1.bf16.msra.mxu0 0
    %176 = vmatprep.subr.bf16.mxu0 0
    %177 = vmatpush1.bf16.msra.mxu0 0
    %178 = vmatprep.subr.bf16.mxu0 0
    %179 = vmatpush1.bf16.msra.mxu0 0
    %180 = vmatprep.subr.bf16.mxu0 0
    %181 = vmatpush1.bf16.msra.mxu0 0
    %182 = vmatprep.subr.bf16.mxu0 0
    %183 = vmatpush1.bf16.msra.mxu0 0
    %184 = vmatprep.subr.bf16.mxu0 0
    %185 = vmatpush1.bf16.msra.mxu0 0
    %186 = vmatprep.subr.bf16.mxu0 0
    %187 = vmatpush1.bf16.msra.mxu0 0
    %188 = vmatprep.mubr.bf16.mxu0 0
    %189 = vmatmul.mubr.bf16.gmra.mrb[0].mxu0 %v154
    %v190 = vpop.f32.mrb[0].mxu0
    %v191 = vadd.f32 %v138, %v190
    %v192 = vpop.f32.mrb[0].mxu0
    %v193 = vpop.f32.mrb[0].mxu0
    %v194 = vpop.f32.mrb[0].mxu0
    %195 = vdwg.mxu0
    %v196 = vmax.f32 %v191, 0.0
    %v197 = vpack.c.bf16 %v196, %v196
    %v198 = vld [vmem:[#allocation9] sm:$0xf]
    %v199 = vld [vmem:[#allocation9 + $0x4] sm:$0xf]
    %v200 = vld [vmem:[#allocation9 + $0x8] sm:$0xf]
    %v201 = vld [vmem:[#allocation9 + $0xc] sm:$0xf]
    %v202 = vld [vmem:[#allocation9 + $0x10] sm:$0xf]
    %v203 = vld [vmem:[#allocation9 + $0x14] sm:$0xf]
    %v204 = vld [vmem:[#allocation9 + $0x18] sm:$0xf]
    %v205 = vld [vmem:[#allocation9 + $0x1c] sm:$0xf]
    %v206 = vld [vmem:[#allocation9 + $0x20] sm:$0xf]
    %v207 = vld [vmem:[#allocation9 + $0x24] sm:$0xf]
    %v208 = vld [vmem:[#allocation9 + $0x28] sm:$0xf]
    %v209 = vld [vmem:[#allocation9 + $0x2c] sm:$0xf]
    %v210 = vld [vmem:[#allocation9 + $0x30] sm:$0xf]
    %v211 = vld [vmem:[#allocation9 + $0x34] sm:$0xf]
    %v212 = vld [vmem:[#allocation9 + $0x38] sm:$0xf]
    %v213 = vld [vmem:[#allocation9 + $0x3c] sm:$0xf]
    %v214 = vld [vmem:[#allocation11] sm:$0xf]
    %v215 = vld [vmem:[#allocation11 + $0x4] sm:$0xf]
    %v216 = vld [vmem:[#allocation11 + $0x8] sm:$0xf]
    %v217 = vld [vmem:[#allocation11 + $0xc] sm:$0xf]
    %v222 = vunpack.c.l.b16 %v214
    %v223 = vunpack.c.l.b16 %v215
    %v224 = vunpack.c.l.b16 %v216
    %v225 = vunpack.c.l.b16 %v217
    %v226 = vpack.c.b16 %v223, %v222
    %v227 = vpack.c.b16 %v225, %v224
    %230 = vmatprep.subr.bf16.mxu0 0
    %231 = vmatpush1.bf16.msra.mxu0 %v226
    %232 = vmatprep.subr.bf16.mxu0 0
    %233 = vmatpush1.bf16.msra.mxu0 %v227
    %234 = vmatprep.subr.bf16.mxu0 0
    %235 = vmatpush1.bf16.msra.mxu0 0
    %236 = vmatprep.subr.bf16.mxu0 0
    %237 = vmatpush1.bf16.msra.mxu0 0
    %238 = vmatprep.subr.bf16.mxu0 0
    %239 = vmatpush1.bf16.msra.mxu0 0
    %240 = vmatprep.subr.bf16.mxu0 0
    %241 = vmatpush1.bf16.msra.mxu0 0
    %242 = vmatprep.subr.bf16.mxu0 0
    %243 = vmatpush1.bf16.msra.mxu0 0
    %244 = vmatprep.subr.bf16.mxu0 0
    %245 = vmatpush1.bf16.msra.mxu0 0
    %246 = vmatprep.subr.bf16.mxu0 0
    %247 = vmatpush1.bf16.msra.mxu0 0
    %248 = vmatprep.subr.bf16.mxu0 0
    %249 = vmatpush1.bf16.msra.mxu0 0
    %250 = vmatprep.subr.bf16.mxu0 0
    %251 = vmatpush1.bf16.msra.mxu0 0
    %252 = vmatprep.subr.bf16.mxu0 0
    %253 = vmatpush1.bf16.msra.mxu0 0
    %254 = vmatprep.subr.bf16.mxu0 0
    %255 = vmatpush1.bf16.msra.mxu0 0
    %256 = vmatprep.subr.bf16.mxu0 0
    %257 = vmatpush1.bf16.msra.mxu0 0
    %258 = vmatprep.subr.bf16.mxu0 0
    %259 = vmatpush1.bf16.msra.mxu0 0
    %260 = vmatprep.subr.bf16.mxu0 0
    %261 = vmatpush1.bf16.msra.mxu0 0
    %262 = vmatprep.mubr.bf16.mxu0 0
    %263 = vmatmul.mubr.bf16.gmra.mrb[0].mxu0 %v154
    %v264 = vpop.f32.mrb[0].mxu0
    %v265 = vadd.f32 0.0, %v264
    %v266 = vpop.f32.mrb[0].mxu0
    %v267 = vpop.f32.mrb[0].mxu0
    %v268 = vpop.f32.mrb[0].mxu0
    %269 = vdwg.mxu0
    %v286 = vunpack.c.l.b16 %v198
    %v287 = vunpack.c.l.b16 %v199
    %v288 = vunpack.c.l.b16 %v200
    %v289 = vunpack.c.l.b16 %v201
    %v290 = vunpack.c.l.b16 %v202
    %v291 = vunpack.c.l.b16 %v203
    %v292 = vunpack.c.l.b16 %v204
    %v293 = vunpack.c.l.b16 %v205
    %v294 = vunpack.c.l.b16 %v206
    %v295 = vunpack.c.l.b16 %v207
    %v296 = vunpack.c.l.b16 %v208
    %v297 = vunpack.c.l.b16 %v209
    %v298 = vunpack.c.l.b16 %v210
    %v299 = vunpack.c.l.b16 %v211
    %v300 = vunpack.c.l.b16 %v212
    %v301 = vunpack.c.l.b16 %v213
    %v302 = vpack.c.b16 %v287, %v286
    %v303 = vpack.c.b16 %v289, %v288
    %v304 = vpack.c.b16 %v291, %v290
    %v305 = vpack.c.b16 %v293, %v292
    %v306 = vpack.c.b16 %v295, %v294
    %v307 = vpack.c.b16 %v297, %v296
    %v308 = vpack.c.b16 %v299, %v298
    %v309 = vpack.c.b16 %v301, %v300
    %318 = vmatprep.subr.bf16.mxu0 0
    %319 = vmatpush1.bf16.msra.mxu0 %v302
    %320 = vmatprep.subr.bf16.mxu0 0
    %321 = vmatpush1.bf16.msra.mxu0 %v303
    %322 = vmatprep.subr.bf16.mxu0 0
    %323 = vmatpush1.bf16.msra.mxu0 %v304
    %324 = vmatprep.subr.bf16.mxu0 0
    %325 = vmatpush1.bf16.msra.mxu0 %v305
    %326 = vmatprep.subr.bf16.mxu0 0
    %327 = vmatpush1.bf16.msra.mxu0 %v306
    %328 = vmatprep.subr.bf16.mxu0 0
    %329 = vmatpush1.bf16.msra.mxu0 %v307
    %330 = vmatprep.subr.bf16.mxu0 0
    %331 = vmatpush1.bf16.msra.mxu0 %v308
    %332 = vmatprep.subr.bf16.mxu0 0
    %333 = vmatpush1.bf16.msra.mxu0 %v309
    %334 = vmatprep.subr.bf16.mxu0 0
    %335 = vmatpush1.bf16.msra.mxu0 0
    %336 = vmatprep.subr.bf16.mxu0 0
    %337 = vmatpush1.bf16.msra.mxu0 0
    %338 = vmatprep.subr.bf16.mxu0 0
    %339 = vmatpush1.bf16.msra.mxu0 0
    %340 = vmatprep.subr.bf16.mxu0 0
    %341 = vmatpush1.bf16.msra.mxu0 0
    %342 = vmatprep.subr.bf16.mxu0 0
    %343 = vmatpush1.bf16.msra.mxu0 0
    %344 = vmatprep.subr.bf16.mxu0 0
    %345 = vmatpush1.bf16.msra.mxu0 0
    %346 = vmatprep.subr.bf16.mxu0 0
    %347 = vmatpush1.bf16.msra.mxu0 0
    %348 = vmatprep.subr.bf16.mxu0 0
    %349 = vmatpush1.bf16.msra.mxu0 0
    %350 = vmatprep.mubr.bf16.mxu0 0
    %351 = vmatmul.mubr.bf16.gmra.mrb[0].mxu0 %v197
    %v352 = vpop.f32.mrb[0].mxu0
    %v353 = vadd.f32 %v265, %v352
    %v354 = vpop.f32.mrb[0].mxu0
    %v355 = vpop.f32.mrb[0].mxu0
    %v356 = vpop.f32.mrb[0].mxu0
    %357 = vdwg.mxu0
    %v358 = vld [vmem:[%s10] sm:$0x1]
    %v360 = vlaneseq
    %v361 = vshrl.u32 %v360, 7
    %v362 = vsub.s32 0, %v361
    %v363 = vrot.slane %v358, %v362
    %v365 = vadd.f32 %v353, %v363
    %v366 = vmax.f32 %v365, 0.0
    %367 = vst [vmem:[#allocation14] sm:$0xff] %v366
    %v368 = vld [vmem:[%s11] sm:$0x1]
    %v370 = vlaneseq
    %v371 = vshrl.u32 %v370, 7
    %v372 = vsub.s32 0, %v371
    %v373 = vrot.slane %v368, %v372
    %v375 = vmul.f32 %v366, %v373
    %376 = vadd.xlane.f32.xlu0 %v375
    %v377 = vpop.xlane.xlu0 %376
    %v378 = vld [vmem:[#allocation6] sm:$0xf]
    %v379 = vld [vmem:[%s4] sm:$0xf]
    %v380 = vld [vmem:[%s4 + $0x4] sm:$0xf]
    %v381 = vld [vmem:[%s4 + $0x8] sm:$0xf]
    %v382 = vld [vmem:[%s4 + $0xc] sm:$0xf]
    %v383 = vld [vmem:[%s5] sm:$0x1]
    %v385 = vlaneseq
    %v386 = vshrl.u32 %v385, 7
    %v387 = vsub.s32 0, %v386
    %v388 = vrot.slane %v383, %v387
    %v394 = vunpack.c.l.b16 %v379
    %v395 = vunpack.c.l.b16 %v380
    %v396 = vunpack.c.l.b16 %v381
    %v397 = vunpack.c.l.b16 %v382
    %v398 = vpack.c.b16 %v395, %v394
    %v399 = vpack.c.b16 %v397, %v396
    %v403 = vsel %vm152, %v378, 0
    %405 = vmatprep.subr.bf16.mxu0 0
    %406 = vmatpush1.bf16.msra.mxu0 %v398
    %407 = vmatprep.subr.bf16.mxu0 0
    %408 = vmatpush1.bf16.msra.mxu0 %v399
    %409 = vmatprep.subr.bf16.mxu0 0
    %410 = vmatpush1.bf16.msra.mxu0 0
    %411 = vmatprep.subr.bf16.mxu0 0
    %412 = vmatpush1.bf16.msra.mxu0 0
    %413 = vmatprep.subr.bf16.mxu0 0
    %414 = vmatpush1.bf16.msra.mxu0 0
    %415 = vmatprep.subr.bf16.mxu0 0
    %416 = vmatpush1.bf16.msra.mxu0 0
    %417 = vmatprep.subr.bf16.mxu0 0
    %418 = vmatpush1.bf16.msra.mxu0 0
    %419 = vmatprep.subr.bf16.mxu0 0
    %420 = vmatpush1.bf16.msra.mxu0 0
    %421 = vmatprep.subr.bf16.mxu0 0
    %422 = vmatpush1.bf16.msra.mxu0 0
    %423 = vmatprep.subr.bf16.mxu0 0
    %424 = vmatpush1.bf16.msra.mxu0 0
    %425 = vmatprep.subr.bf16.mxu0 0
    %426 = vmatpush1.bf16.msra.mxu0 0
    %427 = vmatprep.subr.bf16.mxu0 0
    %428 = vmatpush1.bf16.msra.mxu0 0
    %429 = vmatprep.subr.bf16.mxu0 0
    %430 = vmatpush1.bf16.msra.mxu0 0
    %431 = vmatprep.subr.bf16.mxu0 0
    %432 = vmatpush1.bf16.msra.mxu0 0
    %433 = vmatprep.subr.bf16.mxu0 0
    %434 = vmatpush1.bf16.msra.mxu0 0
    %435 = vmatprep.subr.bf16.mxu0 0
    %436 = vmatpush1.bf16.msra.mxu0 0
    %437 = vmatprep.mubr.bf16.mxu0 0
    %438 = vmatmul.mubr.bf16.gmra.mrb[0].mxu0 %v403
    %v439 = vpop.f32.mrb[0].mxu0
    %v440 = vadd.f32 %v388, %v439
    %v441 = vpop.f32.mrb[0].mxu0
    %v442 = vpop.f32.mrb[0].mxu0
    %v443 = vpop.f32.mrb[0].mxu0
    %444 = vdwg.mxu0
    %v445 = vmax.f32 %v440, 0.0
    %v446 = vpack.c.bf16 %v445, %v445
    %v447 = vld [vmem:[#allocation12] sm:$0xf]
    %v448 = vld [vmem:[#allocation12 + $0x4] sm:$0xf]
    %v449 = vld [vmem:[#allocation12 + $0x8] sm:$0xf]
    %v450 = vld [vmem:[#allocation12 + $0xc] sm:$0xf]
    %v451 = vld [vmem:[#allocation12 + $0x10] sm:$0xf]
    %v452 = vld [vmem:[#allocation12 + $0x14] sm:$0xf]
    %v453 = vld [vmem:[#allocation12 + $0x18] sm:$0xf]
    %v454 = vld [vmem:[#allocation12 + $0x1c] sm:$0xf]
    %v455 = vld [vmem:[#allocation12 + $0x20] sm:$0xf]
    %v456 = vld [vmem:[#allocation12 + $0x24] sm:$0xf]
    %v457 = vld [vmem:[#allocation12 + $0x28] sm:$0xf]
    %v458 = vld [vmem:[#allocation12 + $0x2c] sm:$0xf]
    %v459 = vld [vmem:[#allocation12 + $0x30] sm:$0xf]
    %v460 = vld [vmem:[#allocation12 + $0x34] sm:$0xf]
    %v461 = vld [vmem:[#allocation12 + $0x38] sm:$0xf]
    %v462 = vld [vmem:[#allocation12 + $0x3c] sm:$0xf]
    %v463 = vld [vmem:[%s9] sm:$0xf]
    %v464 = vld [vmem:[%s9 + $0x4] sm:$0xf]
    %v465 = vld [vmem:[%s9 + $0x8] sm:$0xf]
    %v466 = vld [vmem:[%s9 + $0xc] sm:$0xf]
    %v471 = vunpack.c.l.b16 %v463
    %v472 = vunpack.c.l.b16 %v464
    %v473 = vunpack.c.l.b16 %v465
    %v474 = vunpack.c.l.b16 %v466
    %v475 = vpack.c.b16 %v472, %v471
    %v476 = vpack.c.b16 %v474, %v473
    %479 = vmatprep.subr.bf16.mxu0 0
    %480 = vmatpush1.bf16.msra.mxu0 %v475
    %481 = vmatprep.subr.bf16.mxu0 0
    %482 = vmatpush1.bf16.msra.mxu0 %v476
    %483 = vmatprep.subr.bf16.mxu0 0
    %484 = vmatpush1.bf16.msra.mxu0 0
    %485 = vmatprep.subr.bf16.mxu0 0
    %486 = vmatpush1.bf16.msra.mxu0 0
    %487 = vmatprep.subr.bf16.mxu0 0
    %488 = vmatpush1.bf16.msra.mxu0 0
    %489 = vmatprep.subr.bf16.mxu0 0
    %490 = vmatpush1.bf16.msra.mxu0 0
    %491 = vmatprep.subr.bf16.mxu0 0
    %492 = vmatpush1.bf16.msra.mxu0 0
    %493 = vmatprep.subr.bf16.mxu0 0
    %494 = vmatpush1.bf16.msra.mxu0 0
    %495 = vmatprep.subr.bf16.mxu0 0
    %496 = vmatpush1.bf16.msra.mxu0 0
    %497 = vmatprep.subr.bf16.mxu0 0
    %498 = vmatpush1.bf16.msra.mxu0 0
    %499 = vmatprep.subr.bf16.mxu0 0
    %500 = vmatpush1.bf16.msra.mxu0 0
    %501 = vmatprep.subr.bf16.mxu0 0
    %502 = vmatpush1.bf16.msra.mxu0 0
    %503 = vmatprep.subr.bf16.mxu0 0
    %504 = vmatpush1.bf16.msra.mxu0 0
    %505 = vmatprep.subr.bf16.mxu0 0
    %506 = vmatpush1.bf16.msra.mxu0 0
    %507 = vmatprep.subr.bf16.mxu0 0
    %508 = vmatpush1.bf16.msra.mxu0 0
    %509 = vmatprep.subr.bf16.mxu0 0
    %510 = vmatpush1.bf16.msra.mxu0 0
    %511 = vmatprep.mubr.bf16.mxu0 0
    %512 = vmatmul.mubr.bf16.gmra.mrb[0].mxu0 %v403
    %v513 = vpop.f32.mrb[0].mxu0
    %v514 = vadd.f32 0.0, %v513
    %v515 = vpop.f32.mrb[0].mxu0
    %v516 = vpop.f32.mrb[0].mxu0
    %v517 = vpop.f32.mrb[0].mxu0
    %518 = vdwg.mxu0
    %v535 = vunpack.c.l.b16 %v447
    %v536 = vunpack.c.l.b16 %v448
    %v537 = vunpack.c.l.b16 %v449
    %v538 = vunpack.c.l.b16 %v450
    %v539 = vunpack.c.l.b16 %v451
    %v540 = vunpack.c.l.b16 %v452
    %v541 = vunpack.c.l.b16 %v453
    %v542 = vunpack.c.l.b16 %v454
    %v543 = vunpack.c.l.b16 %v455
    %v544 = vunpack.c.l.b16 %v456
    %v545 = vunpack.c.l.b16 %v457
    %v546 = vunpack.c.l.b16 %v458
    %v547 = vunpack.c.l.b16 %v459
    %v548 = vunpack.c.l.b16 %v460
    %v549 = vunpack.c.l.b16 %v461
    %v550 = vunpack.c.l.b16 %v462
    %v551 = vpack.c.b16 %v536, %v535
    %v552 = vpack.c.b16 %v538, %v537
    %v553 = vpack.c.b16 %v540, %v539
    %v554 = vpack.c.b16 %v542, %v541
    %v555 = vpack.c.b16 %v544, %v543
    %v556 = vpack.c.b16 %v546, %v545
    %v557 = vpack.c.b16 %v548, %v547
    %v558 = vpack.c.b16 %v550, %v549
    %567 = vmatprep.subr.bf16.mxu0 0
    %568 = vmatpush1.bf16.msra.mxu0 %v551
    %569 = vmatprep.subr.bf16.mxu0 0
    %570 = vmatpush1.bf16.msra.mxu0 %v552
    %571 = vmatprep.subr.bf16.mxu0 0
    %572 = vmatpush1.bf16.msra.mxu0 %v553
    %573 = vmatprep.subr.bf16.mxu0 0
    %574 = vmatpush1.bf16.msra.mxu0 %v554
    %575 = vmatprep.subr.bf16.mxu0 0
    %576 = vmatpush1.bf16.msra.mxu0 %v555
    %577 = vmatprep.subr.bf16.mxu0 0
    %578 = vmatpush1.bf16.msra.mxu0 %v556
    %579 = vmatprep.subr.bf16.mxu0 0
    %580 = vmatpush1.bf16.msra.mxu0 %v557
    %581 = vmatprep.subr.bf16.mxu0 0
    %582 = vmatpush1.bf16.msra.mxu0 %v558
    %583 = vmatprep.subr.bf16.mxu0 0
    %584 = vmatpush1.bf16.msra.mxu0 0
    %585 = vmatprep.subr.bf16.mxu0 0
    %586 = vmatpush1.bf16.msra.mxu0 0
    %587 = vmatprep.subr.bf16.mxu0 0
    %588 = vmatpush1.bf16.msra.mxu0 0
    %589 = vmatprep.subr.bf16.mxu0 0
    %590 = vmatpush1.bf16.msra.mxu0 0
    %591 = vmatprep.subr.bf16.mxu0 0
    %592 = vmatpush1.bf16.msra.mxu0 0
    %593 = vmatprep.subr.bf16.mxu0 0
    %594 = vmatpush1.bf16.msra.mxu0 0
    %595 = vmatprep.subr.bf16.mxu0 0
    %596 = vmatpush1.bf16.msra.mxu0 0
    %597 = vmatprep.subr.bf16.mxu0 0
    %598 = vmatpush1.bf16.msra.mxu0 0
    %599 = vmatprep.mubr.bf16.mxu0 0
    %600 = vmatmul.mubr.bf16.gmra.mrb[0].mxu0 %v446
    %v601 = vpop.f32.mrb[0].mxu0
    %v602 = vadd.f32 %v514, %v601
    %v603 = vpop.f32.mrb[0].mxu0
    %v604 = vpop.f32.mrb[0].mxu0
    %v605 = vpop.f32.mrb[0].mxu0
    %606 = vdwg.mxu0
    %v607 = vld [vmem:[%s10] sm:$0x1]
    %v609 = vlaneseq
    %v610 = vshrl.u32 %v609, 7
    %v611 = vsub.s32 0, %v610
    %v612 = vrot.slane %v607, %v611
    %v614 = vadd.f32 %v602, %v612
    %v615 = vmax.f32 %v614, 0.0
    %616 = vst [vmem:[#allocation14 + $0x8] sm:$0xff] %v615
    %v617 = vld [vmem:[%s12] sm:$0x1]
    %v619 = vlaneseq
    %v620 = vshrl.u32 %v619, 7
    %v621 = vsub.s32 0, %v620
    %v622 = vrot.slane %v617, %v621
    %v624 = vmul.f32 %v615, %v622
    %625 = vadd.xlane.f32.xlu0 %v624
    %v626 = vpop.xlane.xlu0 %625
    %v627 = vadd.f32 %v377, %v626
    %s628 = sld [smem:[#allocation2]]
    %v629 = vstv %s628
    %v630 = vadd.f32 %v627, %v629
    %v631 = vlaneseq
    %v632 = vand.u32 %v631, 127
    %vm633 = vcmp.eq.s32.totalorder %v632, 0
    %v634 = vsel %vm633, %v630, 0.0
    %635 = vst [vmem:[#allocation14 + $0x10] sm:$0xff] %v634
    // Predicated region
    $region82: #{tpu_custom_call.1} parent=1 // pred_check
      _
    $region83: #{tpu_custom_call.1} parent=1 // pred_check_branch
      %637 = sbr.rel (0) target = $region85
    $region84: #{tpu_custom_call.1} parent=1 // pred_region
      %s639 = ssub.s32 384, 384
      %640 = vsyncadd [#allocation5], %s639
      %s642 = sshll.u32 [#allocation14], 4
      %s643 = int_to_ptr.vmem [resolvable:$true] %s642
      %645 = dma.vmem_to_hbm [thread:$0]  %s643, 384, %s14, [#allocation5]
    $region85: #{tpu_custom_call.1} parent=1 // pred_fallthru
      _
    // Predicated region
    $region86: #{tpu_custom_call.1} parent=1 // pred_check
      _
    $region87: #{tpu_custom_call.1} parent=1 // pred_check_branch
      %647 = sbr.rel (0) target = $region89
    $region88: #{tpu_custom_call.1} parent=1 // pred_region
      %648 = dma.done [#allocation5], 384
    $region89: #{tpu_custom_call.1} parent=1 // pred_fallthru
      _
    %649 = vsyncpa [#allocation4], 1
    %650 = vsyncpa [#allocation7], 1
    %651 = vsyncpa [#allocation10], 1
    %652 = vsyncpa [#allocation13], 1
    %653 = vsyncpa [#allocation5], 1

</llo_original>
